<compile_context>
chip_gen: v5e
topology: v5e:2x2
jax: 0.10.0
libtpu: 0.0.40
codegen_flags: <defaults>
</compile_context>

<pallas_src>
import jax
import jax.numpy as jnp
from jax.experimental import pallas as pl
from jax.experimental.pallas import tpu as pltpu

_LN_EPS = 1e-5                      # torch.nn.LayerNorm default eps
_HIGH = jax.lax.Precision.HIGHEST   # used for the (XLA-side) reference / precompute


def _erf(x):
    # Abramowitz & Stegun 7.1.26 polynomial erf (max abs err ~1.5e-7, i.e. at
    # f32 rounding level).  Keeps torch.nn.GELU()'s exact (erf) formulation
    # inside the kernel with guaranteed-lowerable ops (exp / mul / add / select).
    sgn = jnp.where(x < 0.0, -1.0, 1.0)
    a = jnp.abs(x)
    t = 1.0 / (1.0 + 0.3275911 * a)
    poly = ((((1.061405429 * t - 1.453152027) * t + 1.421413741) * t
             - 0.284496736) * t + 0.254829592) * t
    return sgn * (1.0 - poly * jnp.exp(-a * a))


def _gelu_exact(x):
    # matches torch.nn.GELU() (erf formulation)
    return 0.5 * x * (1.0 + _erf(x * 0.7071067811865476))


def _infuser_body_kernel(x_ref, hpre_ref, scale1_ref, shift_ref,
                         w_ref, b1_ref, b2_ref, bzc_ref,
                         out_ref, res_ref):
    """One grid step == TB batch elements of the main signal.

    x_ref      : (TB, C, HW)  main signal, native NCHW-flattened layout
    hpre_ref   : (TB, C)      norm_in(in_layer(rag-mean(cond)))[i // reps]
    scale1_ref : (TB, C)      1 + scale of shared AdaLayerNorm at timestep[i]
    shift_ref  : (TB, C)      shift  of shared AdaLayerNorm at timestep[i]
    w_ref      : (3C, C)      [w1; w2; w_zero_conv], laid out for h @ W
    b1/b2/bzc  : (1, C)       biases
    out_ref    : (TB, C, HW)  x + res (lane-dense over HW)
    res_ref    : (TB, C)      zero-conv output (spatially constant)
    """
    f32 = jnp.float32
    C = hpre_ref.shape[-1]

    # sig = mean over spatial positions (lane reduction over HW)
    sig_mean = jnp.mean(x_ref[...], axis=-1)                       # (TB, C)
    h = hpre_ref[...] + sig_mean

    scale1 = scale1_ref[...]
    shift = shift_ref[...]
    W = w_ref[...]
    w1, w2, wzc = W[:C], W[C:2 * C], W[2 * C:]

    def ada_affine(v):
        # LayerNorm(no affine)(v) * (1 + scale) + shift (shared MyAdaLayerNorm;
        # scale/shift were precomputed from the timestep embedding).
        mu = jnp.mean(v, axis=-1, keepdims=True)
        var = jnp.mean(jnp.square(v - mu), axis=-1, keepdims=True)
        return (v - mu) * jax.lax.rsqrt(var + _LN_EPS) * scale1 + shift

    # MyLinear.body: 2 x [Linear -> GELU -> AdaLayerNorm(timestep)]
    h = jnp.dot(h, w1, preferred_element_type=f32) + b1_ref[...]
    h = ada_affine(_gelu_exact(h))
    h = jnp.dot(h, w2, preferred_element_type=f32) + b2_ref[...]
    h = ada_affine(_gelu_exact(h))

    # zero_conv (1x1 conv == matmul) -> spatially-constant residual
    res = jnp.dot(h, wzc, preferred_element_type=f32) + bzc_ref[...]   # (TB, C)

    res_ref[...] = res
    out_ref[...] = x_ref[...] + res[:, :, None]     # broadcast res over spatial lanes


def _pick_block_batch(bs, c, hw, budget_bytes=4 << 20):
    """Batch tile TB: divides bs, multiple of 8 (f32 sublane) unless it is the
    whole batch, fits the VMEM budget for double-buffered x/out tiles, and
    keeps >= 2 grid steps when possible (so the 'parallel' batch axis can
    shard across TensorCores)."""
    per_elem = c * hw * 4 * 4            # x tile + out tile, double-buffered, f32
    cap = max(1, budget_bytes // per_elem)
    divs = [d for d in range(1, bs + 1) if bs % d == 0]
    good = [d for d in divs if d <= cap and (d % 8 == 0 or d == bs)]
    if not good:
        return bs
    multi = [d for d in good if bs // d >= 2]
    return max(multi) if multi else max(good)


def init_infuser_params(key, *, channels=32, cross_attention_dim=32,
                        num_embeds_ada_norm=16, zero_init_zero_conv=True):
    """Synthetic parameters matching the module's shapes for channels=[C],
    num_layers=[1] (one MyLinear block + one zero conv, shared MyAdaLayerNorm)."""
    C, Cc, NE = channels, cross_attention_dim, num_embeds_ada_norm
    ks = jax.random.split(key, 11)
    s = 0.05
    p = {
        # MyAdaLayerNorm (single instance shared by norm_in and both body norms)
        'emb_table': jax.random.normal(ks[0], (NE, C), jnp.float32) * s,
        'w_ada': jax.random.normal(ks[1], (2 * C, C), jnp.float32) * s,
        'b_ada': jax.random.normal(ks[2], (2 * C,), jnp.float32) * s,
        # MyLinear.in_layer : Linear(Cc -> C)
        'w_in': jax.random.normal(ks[3], (C, Cc), jnp.float32) * s,
        'b_in': jax.random.normal(ks[4], (C,), jnp.float32) * s,
        # MyLinear.body : 2x Linear(C -> C)
        'w1': jax.random.normal(ks[5], (C, C), jnp.float32) * s,
        'b1': jax.random.normal(ks[6], (C,), jnp.float32) * s,
        'w2': jax.random.normal(ks[7], (C, C), jnp.float32) * s,
        'b2': jax.random.normal(ks[8], (C,), jnp.float32) * s,
    }
    if zero_init_zero_conv:
        # faithful to zero_module(nn.Conv2d(C, C, 1)) at init -> res == 0
        p['w_zc'] = jnp.zeros((C, C, 1, 1), jnp.float32)
        p['b_zc'] = jnp.zeros((C,), jnp.float32)
    else:
        # "as if trained": exercises the full numeric path in the test
        p['w_zc'] = jax.random.normal(ks[9], (C, C, 1, 1), jnp.float32) * s
        p['b_zc'] = jax.random.normal(ks[10], (C,), jnp.float32) * s
    return p


def infuser_add_forward(x, cond, timestep, params, *, num_rag=1, return_tuple=False):
    """Infuser.forward, mode='add', rag_mode='mean', no encoder mask.

    x        : (bs, C, H, W) float32   (NCHW, like the PyTorch module)
    cond     : (b*num_rag, f=1, Ccross) float32
    timestep : (bs,) int32
    """
    bs, C, H, W = x.shape
    br, f, Cc = cond.shape
    assert f == 1, "MyLinear requires cond sequence length f == 1"
    b = br // num_rag
    reps = bs // b
    HW = H * W

    # ----- wrapper precompute: everything independent of x (O(bs*C + b*C^2)) -----
    cond_mean = jnp.mean(cond.reshape(b, num_rag, Cc), axis=1)            # (b, Cc)

    def ada_scale_shift(ts):
        # shared MyAdaLayerNorm: Linear(SiLU(Embedding(t))) -> (scale, shift)
        e = jax.nn.silu(params['emb_table'][ts])
        e = jnp.dot(e, params['w_ada'].T, precision=_HIGH) + params['b_ada']
        return e[:, :C], e[:, C:]

    sc_in, sh_in = ada_scale_shift(timestep[::reps])                      # (b, C)
    sc_bs, sh_bs = ada_scale_shift(timestep)                              # (bs, C)

    # MyLinear.in_layer + norm_in (depends only on cond and timestep[::reps])
    h0 = jnp.dot(cond_mean, params['w_in'].T, precision=_HIGH) + params['b_in']
    mu = jnp.mean(h0, axis=-1, keepdims=True)
    var = jnp.mean(jnp.square(h0 - mu), axis=-1, keepdims=True)
    h_pre = (h0 - mu) * jax.lax.rsqrt(var + _LN_EPS) * (1.0 + sc_in) + sh_in
    h_pre = jnp.repeat(h_pre, reps, axis=0)                               # (bs, C), '(b t)'

    scale1 = 1.0 + sc_bs                                                  # (bs, C)
    shift = sh_bs                                                         # (bs, C)

    # weight slab for the kernel (h @ W layout): [w1; w2; w_zero_conv]
    w_slab = jnp.concatenate(
        [params['w1'].T, params['w2'].T, params['w_zc'][:, :, 0, 0].T], axis=0)  # (3C, C)
    b1 = params['b1'].reshape(1, C)
    b2 = params['b2'].reshape(1, C)
    bzc = params['b_zc'].reshape(1, C)

    # ----- Pallas kernel: streams x exactly once in its native (bs, C, HW) layout -----
    x_flat = x.reshape(bs, C, HW)                      # free reshape of NCHW, no transpose
    TB = _pick_block_batch(bs, C, HW)
    grid = (bs // TB,)

    def const2d(a):
        return pl.BlockSpec(a.shape, lambda i: (0, 0))

    vec_spec = pl.BlockSpec((TB, C), lambda i: (i, 0))

    out_flat, res = pl.pallas_call(
        _infuser_body_kernel,
        out_shape=[jax.ShapeDtypeStruct((bs, C, HW), jnp.float32),
                   jax.ShapeDtypeStruct((bs, C), jnp.float32)],
        grid_spec=pltpu.PrefetchScalarGridSpec(
            num_scalar_prefetch=0,
            grid=grid,
            in_specs=[
                pl.BlockSpec((TB, C, HW), lambda i: (i, 0, 0)),   # x (lane axis = HW)
                vec_spec,                                         # h_pre
                vec_spec,                                         # 1 + scale
                vec_spec,                                         # shift
                const2d(w_slab), const2d(b1), const2d(b2), const2d(bzc),
            ],
            out_specs=[
                pl.BlockSpec((TB, C, HW), lambda i: (i, 0, 0)),   # out (lane-dense)
                vec_spec,                                         # res
            ],
        ),
        compiler_params=pltpu.CompilerParams(
            dimension_semantics=("parallel",)),
    )(x_flat, h_pre, scale1, shift, w_slab, b1, b2, bzc)

    res_4d = res.reshape(bs, C, 1, 1)
    if return_tuple:
        # PyTorch Infuser returns the ORIGINAL x together with res for return_tuple=True.
        return x, res_4d
    return out_flat.reshape(bs, C, H, W)


def _reference_forward(x, cond, timestep, p, *, num_rag=1):
    """Pure-JAX replication of Infuser.forward (mode='add', rag_mode='mean')."""
    bs, C, H, W = x.shape
    b = cond.shape[0] // num_rag
    reps = bs // b
    cond_m = jnp.mean(cond.reshape(b, num_rag, *cond.shape[1:]), axis=1)   # (b, 1, Cc)
    t = timestep[:, None]                                                  # (bs, 1)

    def ada(hh, ts):
        e = jax.nn.silu(p['emb_table'][ts])
        e = jnp.einsum('...i,oi->...o', e, p['w_ada'], precision=_HIGH) + p['b_ada']
        scale, shift = e[..., :C], e[..., C:]
        mu = hh.mean(-1, keepdims=True)
        var = ((hh - mu) ** 2).mean(-1, keepdims=True)
        return (hh - mu) / jnp.sqrt(var + _LN_EPS) * (1.0 + scale) + shift

    h = jnp.einsum('bfc,oc->bfo', cond_m, p['w_in'], precision=_HIGH) + p['b_in']
    h = ada(h, t[::reps])
    h = jnp.repeat(h, reps, axis=0)                                        # (bs, 1, C)
    sig = jnp.mean(x.reshape(bs, C, H * W), axis=2)[:, None, :]            # (bs, 1, C)
    h = h + sig
    for wk, bk in (('w1', 'b1'), ('w2', 'b2')):
        h = jnp.einsum('bfc,oc->bfo', h, p[wk], precision=_HIGH) + p[bk]
        h = jax.nn.gelu(h, approximate=False)
        h = ada(h, t)
    cond_out = h.transpose(0, 2, 1).reshape(bs, C, 1, 1)
    res = jnp.einsum('oc,bcxy->boxy', p['w_zc'][:, :, 0, 0], cond_out,
                     precision=_HIGH) + p['b_zc'][None, :, None, None]
    return x + res


if __name__ == "__main__":
    key = jax.random.PRNGKey(0)
    k_x, k_c, k_t, k_p = jax.random.split(key, 4)

    # Small-but-representative shapes: HW = 256 keeps the streamed output
    # lane-dense; bs = 16 gives a two-step "parallel" batch grid with TB = 8.
    B_COND, NUM_RAG, NUM_FRAMES = 2, 2, 8
    C, CCROSS, H, W = 32, 32, 16, 16
    NUM_EMBEDS = 16
    bs = B_COND * NUM_FRAMES                      # reps = NUM_FRAMES = 8

    x = jax.random.normal(k_x, (bs, C, H, W), jnp.float32)
    cond = jax.random.normal(k_c, (B_COND * NUM_RAG, 1, CCROSS), jnp.float32)
    timestep = jax.random.randint(k_t, (bs,), 0, NUM_EMBEDS, dtype=jnp.int32)

    # zero_init_zero_conv=False -> non-zero residual so the numeric check is
    # non-trivial (zero_module() would make res == 0 and out == x at init).
    params = init_infuser_params(k_p, channels=C, cross_attention_dim=CCROSS,
                                 num_embeds_ada_norm=NUM_EMBEDS,
                                 zero_init_zero_conv=False)

    out = infuser_add_forward(x, cond, timestep, params, num_rag=NUM_RAG)
    out = jax.block_until_ready(out)

    ref = _reference_forward(x, cond, timestep, params, num_rag=NUM_RAG)
    assert out.shape == x.shape and out.dtype == x.dtype
    # residual path actually exercised (non-zero)
    assert float(jnp.max(jnp.abs(out - x))) > 1e-3
    max_err = float(jnp.max(jnp.abs(out - ref)))
    assert jnp.allclose(out, ref, atol=2e-3, rtol=2e-3), f"max_err={max_err}"
    print("KERNEL_OK")
</pallas_src>

<mosaic_0001>
module attributes {stable_mosaic.version = 11 : i64} {
  func.func @_infuser_body_kernel(%arg0: i32, %arg1: memref<8x32x256xf32, #tpu.memory_space<vmem>>, %arg2: memref<8x32xf32, #tpu.memory_space<vmem>>, %arg3: memref<8x32xf32, #tpu.memory_space<vmem>>, %arg4: memref<8x32xf32, #tpu.memory_space<vmem>>, %arg5: memref<96x32xf32, #tpu.memory_space<vmem>>, %arg6: memref<1x32xf32, #tpu.memory_space<vmem>>, %arg7: memref<1x32xf32, #tpu.memory_space<vmem>>, %arg8: memref<1x32xf32, #tpu.memory_space<vmem>>, %arg9: memref<8x32x256xf32, #tpu.memory_space<vmem>>, %arg10: memref<8x32xf32, #tpu.memory_space<vmem>>) attributes {dimension_semantics = [#tpu.dimension_semantics<parallel>], iteration_bounds = array<i64: 2>, scalar_prefetch = 0 : i64, scratch_operands = 0 : i64, tpu.core_type = #tpu.core_type<tc>, window_params = [{transform_indices = @transform_0, window_bounds = array<i64: 8, 32, 256>}, {transform_indices = @transform_1, window_bounds = array<i64: 8, 32>}, {transform_indices = @transform_2, window_bounds = array<i64: 8, 32>}, {transform_indices = @transform_3, window_bounds = array<i64: 8, 32>}, {pipeline_mode = #tpu.pipeline_mode<synchronous>, transform_indices = @transform_4, window_bounds = array<i64: 96, 32>}, {pipeline_mode = #tpu.pipeline_mode<synchronous>, transform_indices = @transform_5, window_bounds = array<i64: 1, 32>}, {pipeline_mode = #tpu.pipeline_mode<synchronous>, transform_indices = @transform_6, window_bounds = array<i64: 1, 32>}, {pipeline_mode = #tpu.pipeline_mode<synchronous>, transform_indices = @transform_7, window_bounds = array<i64: 1, 32>}, {transform_indices = @transform_8, window_bounds = array<i64: 8, 32, 256>}, {transform_indices = @transform_9, window_bounds = array<i64: 8, 32>}]} {
    %c0 = arith.constant 0 : index
    %c0_0 = arith.constant 0 : index
    %c0_1 = arith.constant 0 : index
    %0 = vector.load %arg1[%c0, %c0_0, %c0_1] : memref<8x32x256xf32, #tpu.memory_space<vmem>>, vector<8x32x256xf32>
    %cst = arith.constant dense<0.000000e+00> : vector<8x32xf32>
    %1 = vector.multi_reduction <add>, %0, %cst [2] : vector<8x32x256xf32> to vector<8x32xf32>
    %cst_2 = arith.constant 2.560000e+02 : f32
    %2 = vector.broadcast %cst_2 : f32 to vector<8x32xf32>
    %3 = arith.divf %1, %2 : vector<8x32xf32>
    %c0_3 = arith.constant 0 : index
    %c0_4 = arith.constant 0 : index
    %4 = vector.load %arg2[%c0_3, %c0_4] : memref<8x32xf32, #tpu.memory_space<vmem>>, vector<8x32xf32>
    %5 = arith.addf %4, %3 : vector<8x32xf32>
    %c0_5 = arith.constant 0 : index
    %c0_6 = arith.constant 0 : index
    %6 = vector.load %arg3[%c0_5, %c0_6] : memref<8x32xf32, #tpu.memory_space<vmem>>, vector<8x32xf32>
    %c0_7 = arith.constant 0 : index
    %c0_8 = arith.constant 0 : index
    %7 = vector.load %arg4[%c0_7, %c0_8] : memref<8x32xf32, #tpu.memory_space<vmem>>, vector<8x32xf32>
    %c0_9 = arith.constant 0 : index
    %c0_10 = arith.constant 0 : index
    %8 = vector.load %arg5[%c0_9, %c0_10] : memref<96x32xf32, #tpu.memory_space<vmem>>, vector<96x32xf32>
    %9 = vector.extract_strided_slice %8 {offsets = [0, 0], sizes = [32, 32], strides = [1, 1]} : vector<96x32xf32> to vector<32x32xf32>
    %10 = vector.extract_strided_slice %8 {offsets = [32, 0], sizes = [32, 32], strides = [1, 1]} : vector<96x32xf32> to vector<32x32xf32>
    %11 = vector.extract_strided_slice %8 {offsets = [64, 0], sizes = [32, 32], strides = [1, 1]} : vector<96x32xf32> to vector<32x32xf32>
    %cst_11 = arith.constant dense<0.000000e+00> : vector<8x32xf32>
    %12 = tpu.matmul %5, %9, %cst_11 {dimension_numbers = #tpu.dot_dimension_numbers<[1], [0], [0], [1], [0, 0, 1, 1], [], []>} : vector<8x32xf32>, vector<32x32xf32>, vector<8x32xf32> -> vector<8x32xf32>
    %c0_12 = arith.constant 0 : index
    %c0_13 = arith.constant 0 : index
    %13 = vector.load %arg6[%c0_12, %c0_13] : memref<1x32xf32, #tpu.memory_space<vmem>>, vector<1x32xf32>
    %14 = vector.broadcast %13 : vector<1x32xf32> to vector<8x32xf32>
    %15 = arith.addf %12, %14 : vector<8x32xf32>
    %cst_14 = arith.constant 5.000000e-01 : f32
    %16 = vector.broadcast %cst_14 : f32 to vector<8x32xf32>
    %17 = arith.mulf %16, %15 : vector<8x32xf32>
    %cst_15 = arith.constant 0.707106769 : f32
    %18 = vector.broadcast %cst_15 : f32 to vector<8x32xf32>
    %19 = arith.mulf %15, %18 : vector<8x32xf32>
    %cst_16 = arith.constant 0.000000e+00 : f32
    %20 = vector.broadcast %cst_16 : f32 to vector<8x32xf32>
    %21 = arith.cmpf olt, %19, %20 : vector<8x32xf32>
    %cst_17 = arith.constant -1.000000e+00 : f32
    %cst_18 = arith.constant 1.000000e+00 : f32
    %22 = vector.broadcast %cst_17 : f32 to vector<8x32xf32>
    %23 = vector.broadcast %cst_18 : f32 to vector<8x32xf32>
    %24 = arith.select %21, %22, %23 : vector<8x32xi1>, vector<8x32xf32>
    %25 = math.absf %19 : vector<8x32xf32>
    %cst_19 = arith.constant 0.327591091 : f32
    %26 = vector.broadcast %cst_19 : f32 to vector<8x32xf32>
    %27 = arith.mulf %26, %25 : vector<8x32xf32>
    %cst_20 = arith.constant 1.000000e+00 : f32
    %28 = vector.broadcast %cst_20 : f32 to vector<8x32xf32>
    %29 = arith.addf %28, %27 : vector<8x32xf32>
    %cst_21 = arith.constant 1.000000e+00 : f32
    %30 = vector.broadcast %cst_21 : f32 to vector<8x32xf32>
    %31 = arith.divf %30, %29 : vector<8x32xf32>
    %cst_22 = arith.constant 1.06140542 : f32
    %32 = vector.broadcast %cst_22 : f32 to vector<8x32xf32>
    %33 = arith.mulf %32, %31 : vector<8x32xf32>
    %cst_23 = arith.constant 1.45315206 : f32
    %34 = vector.broadcast %cst_23 : f32 to vector<8x32xf32>
    %35 = arith.subf %33, %34 : vector<8x32xf32>
    %36 = arith.mulf %35, %31 : vector<8x32xf32>
    %cst_24 = arith.constant 1.42141378 : f32
    %37 = vector.broadcast %cst_24 : f32 to vector<8x32xf32>
    %38 = arith.addf %36, %37 : vector<8x32xf32>
    %39 = arith.mulf %38, %31 : vector<8x32xf32>
    %cst_25 = arith.constant 0.284496725 : f32
    %40 = vector.broadcast %cst_25 : f32 to vector<8x32xf32>
    %41 = arith.subf %39, %40 : vector<8x32xf32>
    %42 = arith.mulf %41, %31 : vector<8x32xf32>
    %cst_26 = arith.constant 0.254829586 : f32
    %43 = vector.broadcast %cst_26 : f32 to vector<8x32xf32>
    %44 = arith.addf %42, %43 : vector<8x32xf32>
    %45 = arith.mulf %44, %31 : vector<8x32xf32>
    %cst_27 = arith.constant 0.000000e+00 : f32
    %46 = vector.broadcast %cst_27 : f32 to vector<8x32xf32>
    %47 = arith.subf %46, %25 : vector<8x32xf32>
    %48 = arith.mulf %47, %25 : vector<8x32xf32>
    %49 = math.exp %48 : vector<8x32xf32>
    %50 = arith.mulf %45, %49 : vector<8x32xf32>
    %cst_28 = arith.constant 1.000000e+00 : f32
    %51 = vector.broadcast %cst_28 : f32 to vector<8x32xf32>
    %52 = arith.subf %51, %50 : vector<8x32xf32>
    %53 = arith.mulf %24, %52 : vector<8x32xf32>
    %cst_29 = arith.constant 1.000000e+00 : f32
    %54 = vector.broadcast %cst_29 : f32 to vector<8x32xf32>
    %55 = arith.addf %54, %53 : vector<8x32xf32>
    %56 = arith.mulf %17, %55 : vector<8x32xf32>
    %cst_30 = arith.constant dense<0.000000e+00> : vector<8xf32>
    %57 = vector.multi_reduction <add>, %56, %cst_30 [1] : vector<8x32xf32> to vector<8xf32>
    %58 = vector.shape_cast %57 : vector<8xf32> to vector<8x1xf32>
    %cst_31 = arith.constant 3.200000e+01 : f32
    %59 = vector.broadcast %cst_31 : f32 to vector<8x1xf32>
    %60 = arith.divf %58, %59 : vector<8x1xf32>
    %61 = vector.broadcast %60 : vector<8x1xf32> to vector<8x32xf32>
    %62 = arith.subf %56, %61 : vector<8x32xf32>
    %63 = arith.mulf %62, %62 : vector<8x32xf32>
    %cst_32 = arith.constant dense<0.000000e+00> : vector<8xf32>
    %64 = vector.multi_reduction <add>, %63, %cst_32 [1] : vector<8x32xf32> to vector<8xf32>
    %65 = vector.shape_cast %64 : vector<8xf32> to vector<8x1xf32>
    %cst_33 = arith.constant 3.200000e+01 : f32
    %66 = vector.broadcast %cst_33 : f32 to vector<8x1xf32>
    %67 = arith.divf %65, %66 : vector<8x1xf32>
    %68 = vector.broadcast %60 : vector<8x1xf32> to vector<8x32xf32>
    %69 = arith.subf %56, %68 : vector<8x32xf32>
    %cst_34 = arith.constant 9.99999974E-6 : f32
    %70 = vector.broadcast %cst_34 : f32 to vector<8x1xf32>
    %71 = arith.addf %67, %70 : vector<8x1xf32>
    %72 = math.rsqrt %71 : vector<8x1xf32>
    %73 = vector.broadcast %72 : vector<8x1xf32> to vector<8x32xf32>
    %74 = arith.mulf %69, %73 : vector<8x32xf32>
    %75 = arith.mulf %74, %6 : vector<8x32xf32>
    %76 = arith.addf %75, %7 : vector<8x32xf32>
    %cst_35 = arith.constant dense<0.000000e+00> : vector<8x32xf32>
    %77 = tpu.matmul %76, %10, %cst_35 {dimension_numbers = #tpu.dot_dimension_numbers<[1], [0], [0], [1], [0, 0, 1, 1], [], []>} : vector<8x32xf32>, vector<32x32xf32>, vector<8x32xf32> -> vector<8x32xf32>
    %c0_36 = arith.constant 0 : index
    %c0_37 = arith.constant 0 : index
    %78 = vector.load %arg7[%c0_36, %c0_37] : memref<1x32xf32, #tpu.memory_space<vmem>>, vector<1x32xf32>
    %79 = vector.broadcast %78 : vector<1x32xf32> to vector<8x32xf32>
    %80 = arith.addf %77, %79 : vector<8x32xf32>
    %cst_38 = arith.constant 5.000000e-01 : f32
    %81 = vector.broadcast %cst_38 : f32 to vector<8x32xf32>
    %82 = arith.mulf %81, %80 : vector<8x32xf32>
    %cst_39 = arith.constant 0.707106769 : f32
    %83 = vector.broadcast %cst_39 : f32 to vector<8x32xf32>
    %84 = arith.mulf %80, %83 : vector<8x32xf32>
    %cst_40 = arith.constant 0.000000e+00 : f32
    %85 = vector.broadcast %cst_40 : f32 to vector<8x32xf32>
    %86 = arith.cmpf olt, %84, %85 : vector<8x32xf32>
    %cst_41 = arith.constant -1.000000e+00 : f32
    %cst_42 = arith.constant 1.000000e+00 : f32
    %87 = vector.broadcast %cst_41 : f32 to vector<8x32xf32>
    %88 = vector.broadcast %cst_42 : f32 to vector<8x32xf32>
    %89 = arith.select %86, %87, %88 : vector<8x32xi1>, vector<8x32xf32>
    %90 = math.absf %84 : vector<8x32xf32>
    %cst_43 = arith.constant 0.327591091 : f32
    %91 = vector.broadcast %cst_43 : f32 to vector<8x32xf32>
    %92 = arith.mulf %91, %90 : vector<8x32xf32>
    %cst_44 = arith.constant 1.000000e+00 : f32
    %93 = vector.broadcast %cst_44 : f32 to vector<8x32xf32>
    %94 = arith.addf %93, %92 : vector<8x32xf32>
    %cst_45 = arith.constant 1.000000e+00 : f32
    %95 = vector.broadcast %cst_45 : f32 to vector<8x32xf32>
    %96 = arith.divf %95, %94 : vector<8x32xf32>
    %cst_46 = arith.constant 1.06140542 : f32
    %97 = vector.broadcast %cst_46 : f32 to vector<8x32xf32>
    %98 = arith.mulf %97, %96 : vector<8x32xf32>
    %cst_47 = arith.constant 1.45315206 : f32
    %99 = vector.broadcast %cst_47 : f32 to vector<8x32xf32>
    %100 = arith.subf %98, %99 : vector<8x32xf32>
    %101 = arith.mulf %100, %96 : vector<8x32xf32>
    %cst_48 = arith.constant 1.42141378 : f32
    %102 = vector.broadcast %cst_48 : f32 to vector<8x32xf32>
    %103 = arith.addf %101, %102 : vector<8x32xf32>
    %104 = arith.mulf %103, %96 : vector<8x32xf32>
    %cst_49 = arith.constant 0.284496725 : f32
    %105 = vector.broadcast %cst_49 : f32 to vector<8x32xf32>
    %106 = arith.subf %104, %105 : vector<8x32xf32>
    %107 = arith.mulf %106, %96 : vector<8x32xf32>
    %cst_50 = arith.constant 0.254829586 : f32
    %108 = vector.broadcast %cst_50 : f32 to vector<8x32xf32>
    %109 = arith.addf %107, %108 : vector<8x32xf32>
    %110 = arith.mulf %109, %96 : vector<8x32xf32>
    %cst_51 = arith.constant 0.000000e+00 : f32
    %111 = vector.broadcast %cst_51 : f32 to vector<8x32xf32>
    %112 = arith.subf %111, %90 : vector<8x32xf32>
    %113 = arith.mulf %112, %90 : vector<8x32xf32>
    %114 = math.exp %113 : vector<8x32xf32>
    %115 = arith.mulf %110, %114 : vector<8x32xf32>
    %cst_52 = arith.constant 1.000000e+00 : f32
    %116 = vector.broadcast %cst_52 : f32 to vector<8x32xf32>
    %117 = arith.subf %116, %115 : vector<8x32xf32>
    %118 = arith.mulf %89, %117 : vector<8x32xf32>
    %cst_53 = arith.constant 1.000000e+00 : f32
    %119 = vector.broadcast %cst_53 : f32 to vector<8x32xf32>
    %120 = arith.addf %119, %118 : vector<8x32xf32>
    %121 = arith.mulf %82, %120 : vector<8x32xf32>
    %cst_54 = arith.constant dense<0.000000e+00> : vector<8xf32>
    %122 = vector.multi_reduction <add>, %121, %cst_54 [1] : vector<8x32xf32> to vector<8xf32>
    %123 = vector.shape_cast %122 : vector<8xf32> to vector<8x1xf32>
    %cst_55 = arith.constant 3.200000e+01 : f32
    %124 = vector.broadcast %cst_55 : f32 to vector<8x1xf32>
    %125 = arith.divf %123, %124 : vector<8x1xf32>
    %126 = vector.broadcast %125 : vector<8x1xf32> to vector<8x32xf32>
    %127 = arith.subf %121, %126 : vector<8x32xf32>
    %128 = arith.mulf %127, %127 : vector<8x32xf32>
    %cst_56 = arith.constant dense<0.000000e+00> : vector<8xf32>
    %129 = vector.multi_reduction <add>, %128, %cst_56 [1] : vector<8x32xf32> to vector<8xf32>
    %130 = vector.shape_cast %129 : vector<8xf32> to vector<8x1xf32>
    %cst_57 = arith.constant 3.200000e+01 : f32
    %131 = vector.broadcast %cst_57 : f32 to vector<8x1xf32>
    %132 = arith.divf %130, %131 : vector<8x1xf32>
    %133 = vector.broadcast %125 : vector<8x1xf32> to vector<8x32xf32>
    %134 = arith.subf %121, %133 : vector<8x32xf32>
    %cst_58 = arith.constant 9.99999974E-6 : f32
    %135 = vector.broadcast %cst_58 : f32 to vector<8x1xf32>
    %136 = arith.addf %132, %135 : vector<8x1xf32>
    %137 = math.rsqrt %136 : vector<8x1xf32>
    %138 = vector.broadcast %137 : vector<8x1xf32> to vector<8x32xf32>
    %139 = arith.mulf %134, %138 : vector<8x32xf32>
    %140 = arith.mulf %139, %6 : vector<8x32xf32>
    %141 = arith.addf %140, %7 : vector<8x32xf32>
    %cst_59 = arith.constant dense<0.000000e+00> : vector<8x32xf32>
    %142 = tpu.matmul %141, %11, %cst_59 {dimension_numbers = #tpu.dot_dimension_numbers<[1], [0], [0], [1], [0, 0, 1, 1], [], []>} : vector<8x32xf32>, vector<32x32xf32>, vector<8x32xf32> -> vector<8x32xf32>
    %c0_60 = arith.constant 0 : index
    %c0_61 = arith.constant 0 : index
    %143 = vector.load %arg8[%c0_60, %c0_61] : memref<1x32xf32, #tpu.memory_space<vmem>>, vector<1x32xf32>
    %144 = vector.broadcast %143 : vector<1x32xf32> to vector<8x32xf32>
    %145 = arith.addf %142, %144 : vector<8x32xf32>
    %c0_62 = arith.constant 0 : index
    %c0_63 = arith.constant 0 : index
    %146 = vector.load %arg10[%c0_62, %c0_63] : memref<8x32xf32, #tpu.memory_space<vmem>>, vector<8x32xf32>
    tpu.vector_store %arg10[%c0_62, %c0_63], %145 {strides = array<i32>} : memref<8x32xf32, #tpu.memory_space<vmem>>, vector<8x32xf32>,
    %c0_64 = arith.constant 0 : index
    %c0_65 = arith.constant 0 : index
    %c0_66 = arith.constant 0 : index
    %147 = vector.load %arg1[%c0_64, %c0_65, %c0_66] : memref<8x32x256xf32, #tpu.memory_space<vmem>>, vector<8x32x256xf32>
    %148 = vector.shape_cast %145 : vector<8x32xf32> to vector<8x32x1xf32>
    %149 = vector.broadcast %148 : vector<8x32x1xf32> to vector<8x32x256xf32>
    %150 = arith.addf %147, %149 : vector<8x32x256xf32>
    %c0_67 = arith.constant 0 : index
    %c0_68 = arith.constant 0 : index
    %c0_69 = arith.constant 0 : index
    %151 = vector.load %arg9[%c0_67, %c0_68, %c0_69] : memref<8x32x256xf32, #tpu.memory_space<vmem>>, vector<8x32x256xf32>
    tpu.vector_store %arg9[%c0_67, %c0_68, %c0_69], %150 {strides = array<i32>} : memref<8x32x256xf32, #tpu.memory_space<vmem>>, vector<8x32x256xf32>,
    return
  }
  func.func @transform_0(%arg0: i32) -> (i32, i32, i32) {
    %c0_i32 = arith.constant 0 : i32
    %c0_i32_0 = arith.constant 0 : i32
    %c0_i32_1 = arith.constant 0 : i32
    return %arg0, %c0_i32, %c0_i32_0 : i32, i32, i32
  }
  func.func @transform_1(%arg0: i32) -> (i32, i32) {
    %c0_i32 = arith.constant 0 : i32
    %c0_i32_0 = arith.constant 0 : i32
    return %arg0, %c0_i32 : i32, i32
  }
  func.func @transform_2(%arg0: i32) -> (i32, i32) {
    %c0_i32 = arith.constant 0 : i32
    %c0_i32_0 = arith.constant 0 : i32
    return %arg0, %c0_i32 : i32, i32
  }
  func.func @transform_3(%arg0: i32) -> (i32, i32) {
    %c0_i32 = arith.constant 0 : i32
    %c0_i32_0 = arith.constant 0 : i32
    return %arg0, %c0_i32 : i32, i32
  }
  func.func @transform_4(%arg0: i32) -> (i32, i32) {
    %c0_i32 = arith.constant 0 : i32
    %c0_i32_0 = arith.constant 0 : i32
    %c0_i32_1 = arith.constant 0 : i32
    return %c0_i32, %c0_i32_0 : i32, i32
  }
  func.func @transform_5(%arg0: i32) -> (i32, i32) {
    %c0_i32 = arith.constant 0 : i32
    %c0_i32_0 = arith.constant 0 : i32
    %c0_i32_1 = arith.constant 0 : i32
    return %c0_i32, %c0_i32_0 : i32, i32
  }
  func.func @transform_6(%arg0: i32) -> (i32, i32) {
    %c0_i32 = arith.constant 0 : i32
    %c0_i32_0 = arith.constant 0 : i32
    %c0_i32_1 = arith.constant 0 : i32
    return %c0_i32, %c0_i32_0 : i32, i32
  }
  func.func @transform_7(%arg0: i32) -> (i32, i32) {
    %c0_i32 = arith.constant 0 : i32
    %c0_i32_0 = arith.constant 0 : i32
    %c0_i32_1 = arith.constant 0 : i32
    return %c0_i32, %c0_i32_0 : i32, i32
  }
  func.func @transform_8(%arg0: i32) -> (i32, i32, i32) {
    %c0_i32 = arith.constant 0 : i32
    %c0_i32_0 = arith.constant 0 : i32
    %c0_i32_1 = arith.constant 0 : i32
    return %arg0, %c0_i32, %c0_i32_0 : i32, i32, i32
  }
  func.func @transform_9(%arg0: i32) -> (i32, i32) {
    %c0_i32 = arith.constant 0 : i32
    %c0_i32_0 = arith.constant 0 : i32
    return %arg0, %c0_i32 : i32, i32
  }
}

</mosaic_0001>

<llo_original>
// kernel: tpu_custom_call.1
$region0: #{tpu_custom_call.1}
  #allocation0 [shape = 'u32[]', space=smem, size = 0x4, offset = 0x4, fixed_abs, tag = 'smem constant byte address 0x4 - core index']
  #allocation1 [shape = 'u32[72,128]{1,0:T(1,128)}', space=vmem, size = 0x9000, scoped, tag = 'internal scratch']
  %s0 = inlined_call_operand.hbm [shape: f32[16,32,256], index: 0, kind: input, shape index: {}]
  %s1 = inlined_call_operand.vmem [shape: f32[16,32], index: 1, kind: input, shape index: {}]
  %s2 = inlined_call_operand.vmem [shape: f32[16,32], index: 2, kind: input, shape index: {}]
  %s3 = inlined_call_operand.vmem [shape: f32[16,32], index: 3, kind: input, shape index: {}]
  %s4 = inlined_call_operand.vmem [shape: f32[96,32], index: 4, kind: input, shape index: {}]
  %s5 = inlined_call_operand.vmem [shape: f32[1,32], index: 5, kind: input, shape index: {}]
  %s6 = inlined_call_operand.vmem [shape: f32[1,32], index: 6, kind: input, shape index: {}]
  %s7 = inlined_call_operand.vmem [shape: f32[1,32], index: 7, kind: input, shape index: {}]
  %s8 = inlined_call_operand.hbm [shape: f32[16,32,256], index: 8, kind: output, shape index: {0}]
  %s9 = inlined_call_operand.hbm [shape: f32[16,32], index: 9, kind: output, shape index: {1}]
  %10 = xla_tuple %s8, %s9
  %s11 = sld [smem:[#allocation0]]
  $region77: #{tpu_custom_call.1} parent=0
    _
  %s13 = ssub.s32 1, %s11
  %s14 = scalar_select 0, %s13, %s11
  $region1: #{tpu_custom_call.1} parent=0
    #allocation2 [shape = 'u8[524288]{0}', space=vmem, size = 0x80000, scoped, tag = 'input window, operand 0']
    #allocation3 [shape = 's32[2]{0}', space=sflag, size = 0x8, scoped, tag = 'scoped memory for tpu_custom_call.1']
    #allocation4 [shape = 's32[2]{0}', space=sflag, size = 0x8, scoped, tag = 'scoped memory for tpu_custom_call.1']
    #allocation5 [shape = 'u8[524288]{0}', space=vmem, size = 0x80000, scoped, tag = 'output window, operand 0']
    #allocation6 [shape = 'u8[8192]{0}', space=vmem, size = 0x2000, scoped, tag = 'output window, operand 1']
    #allocation7 [shape = 's32[2]{0}', space=sflag, size = 0x8, scoped, tag = 'scoped memory for tpu_custom_call.1']
    %15 = vsyncpa [#allocation3], 0
    %s16 = scalar_lea.sflag [#allocation3], 1
    %17 = vsyncpa %s16, 0
    %18 = vsyncpa [#allocation4], 0
    %s19 = scalar_lea.sflag [#allocation4], 1
    %20 = vsyncpa %s19, 0
    %21 = vsyncpa [#allocation7], 0
    %s22 = scalar_lea.sflag [#allocation7], 1
    %23 = vsyncpa %s22, 0
    loop: start=0, step=1, limit=4
    $region2: #{tpu_custom_call.1} parent=1 // loop_pre_header
      _
    $region3: #{tpu_custom_call.1} parent=1 // loop_header
      %s25 = sphi 0, %s29
      %p26 = scmp.ge.s32.totalorder %s25, 4
      %s35 = sphi 0, %s37
      %s38 = sphi 0, %s35
      %s39 = sphi 0, %s38
      %s55 = sphi 0, %s39
      %s61 = sphi 0, %s63
      %s64 = sphi 0, %s61
      %s65 = sphi 0, %s64
      %s81 = sphi 0, %s65
      %s87 = sphi 0, %s89
      %s90 = sphi 0, %s87
      %s91 = sphi 0, %s90
      %s107 = sphi 0, %s91
      %s113 = sphi 0, %s115
      %s116 = sphi 0, %s113
      %s117 = sphi 0, %s116
      %s133 = sphi 0, %s117
      %s137 = sphi 0, %s137
      %s139 = sphi 0, %s137
      %s140 = sphi 0, %s139
      %s154 = sphi 0, %s140
      %s158 = sphi 0, %s158
      %s160 = sphi 0, %s158
      %s161 = sphi 0, %s160
      %s175 = sphi 0, %s161
      %s179 = sphi 0, %s179
      %s181 = sphi 0, %s179
      %s182 = sphi 0, %s181
      %s196 = sphi 0, %s182
      %s200 = sphi 0, %s200
      %s202 = sphi 0, %s200
      %s203 = sphi 0, %s202
      %s217 = sphi 0, %s203
      %s223 = sphi 0, %s225
      %s226 = sphi 0, %s223
      %s227 = sphi 0, %s226
      %s243 = sphi 0, %s227
      %s249 = sphi 0, %s251
      %s252 = sphi 0, %s249
      %s253 = sphi 0, %s252
      %s269 = sphi 0, %s253
    $region4: #{tpu_custom_call.1} parent=1 // loop_header_branch
      %28 = sbr.rel (%p26) target = $region8
    $region5: #{tpu_custom_call.1} parent=1 // loop_body
      %s30 = ssub.s32 %s25, 1
      %s31 = ssub.s32 %s25, 2
      %s32 = sadd.s32 %s25, 1
      %s33 = ssub.s32 %s25, %s32
      %p34 = scmp.eq.s32.totalorder %s33, 0
      %s36 = sadd.s32 %s35, 1
      %s37 = scalar_select %p34, %s35, %s36
      %p40 = pneg %p34
      %p41 = scmp.eq.s32.totalorder %s25, 1
      %p42 = por %p40, %p41
      %p43 = scmp.ne.s32.totalorder %s35, %s38
      %p44 = scmp.eq.s32.totalorder %s25, 0
      %p45 = por %p43, %p44
      %p46 = scmp.ne.s32.totalorder %s35, %s38
      %p47 = scmp.eq.s32.totalorder %s30, 1
      %p48 = por %p46, %p47
      %p49 = scmp.ne.s32.totalorder %s38, %s39
      %p50 = scmp.eq.s32.totalorder %s30, 0
      %p51 = por %p49, %p50
      %p52 = scmp.ne.s32.totalorder %s38, %s39
      %p53 = scmp.eq.s32.totalorder %s31, 1
      %p54 = por %p52, %p53
      %p56 = scmp.ne.s32.totalorder %s39, %s55
      %p57 = scmp.eq.s32.totalorder %s31, 0
      %p58 = por %p56, %p57
      %s59 = ssub.s32 %s25, %s32
      %p60 = scmp.eq.s32.totalorder %s59, 0
      %s62 = sadd.s32 %s61, 1
      %s63 = scalar_select %p60, %s61, %s62
      %p66 = pneg %p60
      %p67 = scmp.eq.s32.totalorder %s25, 1
      %p68 = por %p66, %p67
      %p69 = scmp.ne.s32.totalorder %s61, %s64
      %p70 = scmp.eq.s32.totalorder %s25, 0
      %p71 = por %p69, %p70
      %p72 = scmp.ne.s32.totalorder %s61, %s64
      %p73 = scmp.eq.s32.totalorder %s30, 1
      %p74 = por %p72, %p73
      %p75 = scmp.ne.s32.totalorder %s64, %s65
      %p76 = scmp.eq.s32.totalorder %s30, 0
      %p77 = por %p75, %p76
      %p78 = scmp.ne.s32.totalorder %s64, %s65
      %p79 = scmp.eq.s32.totalorder %s31, 1
      %p80 = por %p78, %p79
      %p82 = scmp.ne.s32.totalorder %s65, %s81
      %p83 = scmp.eq.s32.totalorder %s31, 0
      %p84 = por %p82, %p83
      %s85 = ssub.s32 %s25, %s32
      %p86 = scmp.eq.s32.totalorder %s85, 0
      %s88 = sadd.s32 %s87, 1
      %s89 = scalar_select %p86, %s87, %s88
      %p92 = pneg %p86
      %p93 = scmp.eq.s32.totalorder %s25, 1
      %p94 = por %p92, %p93
      %p95 = scmp.ne.s32.totalorder %s87, %s90
      %p96 = scmp.eq.s32.totalorder %s25, 0
      %p97 = por %p95, %p96
      %p98 = scmp.ne.s32.totalorder %s87, %s90
      %p99 = scmp.eq.s32.totalorder %s30, 1
      %p100 = por %p98, %p99
      %p101 = scmp.ne.s32.totalorder %s90, %s91
      %p102 = scmp.eq.s32.totalorder %s30, 0
      %p103 = por %p101, %p102
      %p104 = scmp.ne.s32.totalorder %s90, %s91
      %p105 = scmp.eq.s32.totalorder %s31, 1
      %p106 = por %p104, %p105
      %p108 = scmp.ne.s32.totalorder %s91, %s107
      %p109 = scmp.eq.s32.totalorder %s31, 0
      %p110 = por %p108, %p109
      %s111 = ssub.s32 %s25, %s32
      %p112 = scmp.eq.s32.totalorder %s111, 0
      %s114 = sadd.s32 %s113, 1
      %s115 = scalar_select %p112, %s113, %s114
      %p118 = pneg %p112
      %p119 = scmp.eq.s32.totalorder %s25, 1
      %p120 = por %p118, %p119
      %p121 = scmp.ne.s32.totalorder %s113, %s116
      %p122 = scmp.eq.s32.totalorder %s25, 0
      %p123 = por %p121, %p122
      %p124 = scmp.ne.s32.totalorder %s113, %s116
      %p125 = scmp.eq.s32.totalorder %s30, 1
      %p126 = por %p124, %p125
      %p127 = scmp.ne.s32.totalorder %s116, %s117
      %p128 = scmp.eq.s32.totalorder %s30, 0
      %p129 = por %p127, %p128
      %p130 = scmp.ne.s32.totalorder %s116, %s117
      %p131 = scmp.eq.s32.totalorder %s31, 1
      %p132 = por %p130, %p131
      %p134 = scmp.ne.s32.totalorder %s117, %s133
      %p135 = scmp.eq.s32.totalorder %s31, 0
      %p136 = por %p134, %p135
      %s138 = sadd.s32 %s137, 1
      %p141 = scmp.eq.s32.totalorder %s25, 1
      %p142 = scmp.ne.s32.totalorder %s137, %s139
      %p143 = scmp.eq.s32.totalorder %s25, 0
      %p144 = por %p142, %p143
      %p145 = scmp.ne.s32.totalorder %s137, %s139
      %p146 = scmp.eq.s32.totalorder %s30, 1
      %p147 = por %p145, %p146
      %p148 = scmp.ne.s32.totalorder %s139, %s140
      %p149 = scmp.eq.s32.totalorder %s30, 0
      %p150 = por %p148, %p149
      %p151 = scmp.ne.s32.totalorder %s139, %s140
      %p152 = scmp.eq.s32.totalorder %s31, 1
      %p153 = por %p151, %p152
      %p155 = scmp.ne.s32.totalorder %s140, %s154
      %p156 = scmp.eq.s32.totalorder %s31, 0
      %p157 = por %p155, %p156
      %s159 = sadd.s32 %s158, 1
      %p162 = scmp.eq.s32.totalorder %s25, 1
      %p163 = scmp.ne.s32.totalorder %s158, %s160
      %p164 = scmp.eq.s32.totalorder %s25, 0
      %p165 = por %p163, %p164
      %p166 = scmp.ne.s32.totalorder %s158, %s160
      %p167 = scmp.eq.s32.totalorder %s30, 1
      %p168 = por %p166, %p167
      %p169 = scmp.ne.s32.totalorder %s160, %s161
      %p170 = scmp.eq.s32.totalorder %s30, 0
      %p171 = por %p169, %p170
      %p172 = scmp.ne.s32.totalorder %s160, %s161
      %p173 = scmp.eq.s32.totalorder %s31, 1
      %p174 = por %p172, %p173
      %p176 = scmp.ne.s32.totalorder %s161, %s175
      %p177 = scmp.eq.s32.totalorder %s31, 0
      %p178 = por %p176, %p177
      %s180 = sadd.s32 %s179, 1
      %p183 = scmp.eq.s32.totalorder %s25, 1
      %p184 = scmp.ne.s32.totalorder %s179, %s181
      %p185 = scmp.eq.s32.totalorder %s25, 0
      %p186 = por %p184, %p185
      %p187 = scmp.ne.s32.totalorder %s179, %s181
      %p188 = scmp.eq.s32.totalorder %s30, 1
      %p189 = por %p187, %p188
      %p190 = scmp.ne.s32.totalorder %s181, %s182
      %p191 = scmp.eq.s32.totalorder %s30, 0
      %p192 = por %p190, %p191
      %p193 = scmp.ne.s32.totalorder %s181, %s182
      %p194 = scmp.eq.s32.totalorder %s31, 1
      %p195 = por %p193, %p194
      %p197 = scmp.ne.s32.totalorder %s182, %s196
      %p198 = scmp.eq.s32.totalorder %s31, 0
      %p199 = por %p197, %p198
      %s201 = sadd.s32 %s200, 1
      %p204 = scmp.eq.s32.totalorder %s25, 1
      %p205 = scmp.ne.s32.totalorder %s200, %s202
      %p206 = scmp.eq.s32.totalorder %s25, 0
      %p207 = por %p205, %p206
      %p208 = scmp.ne.s32.totalorder %s200, %s202
      %p209 = scmp.eq.s32.totalorder %s30, 1
      %p210 = por %p208, %p209
      %p211 = scmp.ne.s32.totalorder %s202, %s203
      %p212 = scmp.eq.s32.totalorder %s30, 0
      %p213 = por %p211, %p212
      %p214 = scmp.ne.s32.totalorder %s202, %s203
      %p215 = scmp.eq.s32.totalorder %s31, 1
      %p216 = por %p214, %p215
      %p218 = scmp.ne.s32.totalorder %s203, %s217
      %p219 = scmp.eq.s32.totalorder %s31, 0
      %p220 = por %p218, %p219
      %s221 = ssub.s32 %s25, %s32
      %p222 = scmp.eq.s32.totalorder %s221, 0
      %s224 = sadd.s32 %s223, 1
      %s225 = scalar_select %p222, %s223, %s224
      %p228 = pneg %p222
      %p229 = scmp.eq.s32.totalorder %s25, 1
      %p230 = por %p228, %p229
      %p231 = scmp.ne.s32.totalorder %s223, %s226
      %p232 = scmp.eq.s32.totalorder %s25, 0
      %p233 = por %p231, %p232
      %p234 = scmp.ne.s32.totalorder %s223, %s226
      %p235 = scmp.eq.s32.totalorder %s30, 1
      %p236 = por %p234, %p235
      %p237 = scmp.ne.s32.totalorder %s226, %s227
      %p238 = scmp.eq.s32.totalorder %s30, 0
      %p239 = por %p237, %p238
      %p240 = scmp.ne.s32.totalorder %s226, %s227
      %p241 = scmp.eq.s32.totalorder %s31, 1
      %p242 = por %p240, %p241
      %p244 = scmp.ne.s32.totalorder %s227, %s243
      %p245 = scmp.eq.s32.totalorder %s31, 0
      %p246 = por %p244, %p245
      %s247 = ssub.s32 %s25, %s32
      %p248 = scmp.eq.s32.totalorder %s247, 0
      %s250 = sadd.s32 %s249, 1
      %s251 = scalar_select %p248, %s249, %s250
      %p254 = pneg %p248
      %p255 = scmp.eq.s32.totalorder %s25, 1
      %p256 = por %p254, %p255
      %p257 = scmp.ne.s32.totalorder %s249, %s252
      %p258 = scmp.eq.s32.totalorder %s25, 0
      %p259 = por %p257, %p258
      %p260 = scmp.ne.s32.totalorder %s249, %s252
      %p261 = scmp.eq.s32.totalorder %s30, 1
      %p262 = por %p260, %p261
      %p263 = scmp.ne.s32.totalorder %s252, %s253
      %p264 = scmp.eq.s32.totalorder %s30, 0
      %p265 = por %p263, %p264
      %p266 = scmp.ne.s32.totalorder %s252, %s253
      %p267 = scmp.eq.s32.totalorder %s31, 1
      %p268 = por %p266, %p267
      %p270 = scmp.ne.s32.totalorder %s253, %s269
      %p271 = scmp.eq.s32.totalorder %s31, 0
      %p272 = por %p270, %p271
      %p273 = scmp.le.s32.totalorder 1, %s25
      %p274 = scmp.lt.s32.totalorder %s25, 3
      %p275 = pnand %p273, %p274
      %p276 = pneg %p275
      // Predicated region
      $region9: #{tpu_custom_call.1} parent=5 // pred_check
        _
      $region10: #{tpu_custom_call.1} parent=5 // pred_check_branch
        %278 = sbr.rel (%p275) target = $region12
      $region11: #{tpu_custom_call.1} parent=5 // pred_region
        %s279 = ssub.s32 %s25, 1
        // Predicated region
        $region13: #{tpu_custom_call.1} parent=11 // pred_check
          %p280 = pneg %p150
        $region14: #{tpu_custom_call.1} parent=11 // pred_check_branch
          %282 = sbr.rel (%p280) target = $region16
        $region15: #{tpu_custom_call.1} parent=11 // pred_region
          _
        $region16: #{tpu_custom_call.1} parent=11 // pred_fallthru
          _
        // Predicated region
        $region17: #{tpu_custom_call.1} parent=11 // pred_check
          %p283 = pneg %p171
        $region18: #{tpu_custom_call.1} parent=11 // pred_check_branch
          %285 = sbr.rel (%p283) target = $region20
        $region19: #{tpu_custom_call.1} parent=11 // pred_region
          _
        $region20: #{tpu_custom_call.1} parent=11 // pred_fallthru
          _
        // Predicated region
        $region21: #{tpu_custom_call.1} parent=11 // pred_check
          %p286 = pneg %p192
        $region22: #{tpu_custom_call.1} parent=11 // pred_check_branch
          %288 = sbr.rel (%p286) target = $region24
        $region23: #{tpu_custom_call.1} parent=11 // pred_region
          _
        $region24: #{tpu_custom_call.1} parent=11 // pred_fallthru
          _
        // Predicated region
        $region25: #{tpu_custom_call.1} parent=11 // pred_check
          %p289 = pneg %p213
        $region26: #{tpu_custom_call.1} parent=11 // pred_check_branch
          %291 = sbr.rel (%p289) target = $region28
        $region27: #{tpu_custom_call.1} parent=11 // pred_region
          _
        $region28: #{tpu_custom_call.1} parent=11 // pred_fallthru
          _
      $region12: #{tpu_custom_call.1} parent=5 // pred_fallthru
        _
      %p292 = scmp.lt.s32.totalorder %s25, 2
      // Predicated region
      $region29: #{tpu_custom_call.1} parent=5 // pred_check
        %p293 = pneg %p292
      $region30: #{tpu_custom_call.1} parent=5 // pred_check_branch
        %295 = sbr.rel (%p293) target = $region32
      $region31: #{tpu_custom_call.1} parent=5 // pred_region
        // Predicated region
        $region33: #{tpu_custom_call.1} parent=31 // pred_check
          %p296 = pneg %p45
        $region34: #{tpu_custom_call.1} parent=31 // pred_check_branch
          %298 = sbr.rel (%p296) target = $region36
        $region35: #{tpu_custom_call.1} parent=31 // pred_region
          %s299 = sand.u32 %s35, 1
          %s300 = scalar_lea.sflag [#allocation3], %s299
          %s301 = sand.u32 %s35, 1
          %s302 = smul.addr %s301, 512
          %s303 = scalar_lea.vmem [#allocation2], %s302
          %s304 = smul.u32 8, %s25
          %306 = vsyncadd %s300, 0
          %s307 = smul.addr %s304, 8
          %s308 = smul.addr %s307, 8
          %s309 = scalar_lea.hbm %s0, %s308
          %s310 = sshll.u32 %s309, 4
          %s311 = int_to_ptr.hbm [resolvable:$true] %s310
          %s312 = sshll.u32 %s303, 4
          %s313 = int_to_ptr.vmem [resolvable:$true] %s312
          %318 = dma.hbm_to_vmem [thread:$0]  %s311, 8192, %s313, %s300, 256, 256, 16
        $region36: #{tpu_custom_call.1} parent=31 // pred_fallthru
          _
        // Predicated region
        $region37: #{tpu_custom_call.1} parent=31 // pred_check
          %p319 = pneg %p71
        $region38: #{tpu_custom_call.1} parent=31 // pred_check_branch
          %321 = sbr.rel (%p319) target = $region40
        $region39: #{tpu_custom_call.1} parent=31 // pred_region
          %p322 = scmp.lt.s32.totalorder %s25, 1
          %s323 = scalar_select %p322, %s25, 1
          %s324 = smul.addr %s323, 8
          %s325 = scalar_lea.vmem %s1, %s324
        $region40: #{tpu_custom_call.1} parent=31 // pred_fallthru
          _
        // Predicated region
        $region41: #{tpu_custom_call.1} parent=31 // pred_check
          %p326 = pneg %p97
        $region42: #{tpu_custom_call.1} parent=31 // pred_check_branch
          %328 = sbr.rel (%p326) target = $region44
        $region43: #{tpu_custom_call.1} parent=31 // pred_region
          %p329 = scmp.lt.s32.totalorder %s25, 1
          %s330 = scalar_select %p329, %s25, 1
          %s331 = smul.addr %s330, 8
          %s332 = scalar_lea.vmem %s2, %s331
        $region44: #{tpu_custom_call.1} parent=31 // pred_fallthru
          _
        // Predicated region
        $region45: #{tpu_custom_call.1} parent=31 // pred_check
          %p333 = pneg %p123
        $region46: #{tpu_custom_call.1} parent=31 // pred_check_branch
          %335 = sbr.rel (%p333) target = $region48
        $region47: #{tpu_custom_call.1} parent=31 // pred_region
          %p336 = scmp.lt.s32.totalorder %s25, 1
          %s337 = scalar_select %p336, %s25, 1
          %s338 = smul.addr %s337, 8
          %s339 = scalar_lea.vmem %s3, %s338
        $region48: #{tpu_custom_call.1} parent=31 // pred_fallthru
          _
      $region32: #{tpu_custom_call.1} parent=5 // pred_fallthru
        _
      %p340 = scmp.le.s32.totalorder 1, %s25
      %p341 = scmp.lt.s32.totalorder %s25, 3
      %p342 = pnand %p340, %p341
      %p343 = pneg %p342
      // Predicated region
      $region49: #{tpu_custom_call.1} parent=5 // pred_check
        _
      $region50: #{tpu_custom_call.1} parent=5 // pred_check_branch
        %345 = sbr.rel (%p342) target = $region52
      $region51: #{tpu_custom_call.1} parent=5 // pred_region
        %s346 = ssub.s32 %s25, 1
        %s347 = sand.u32 %s38, 1
        %s348 = scalar_lea.sflag [#allocation3], %s347
        %s349 = sand.u32 %s38, 1
        %s350 = smul.addr %s349, 512
        %s351 = scalar_lea.vmem [#allocation2], %s350
        // Predicated region
        $region53: #{tpu_custom_call.1} parent=51 // pred_check
          %p352 = pneg %p51
        $region54: #{tpu_custom_call.1} parent=51 // pred_check_branch
          %354 = sbr.rel (%p352) target = $region56
        $region55: #{tpu_custom_call.1} parent=51 // pred_region
          %356 = dma.done %s348, 8192
        $region56: #{tpu_custom_call.1} parent=51 // pred_fallthru
          _
        %s357 = sand.u32 %s38, 1
        %s358 = scalar_lea.sflag [#allocation3], %s357
        %s359 = sand.u32 %s38, 1
        %s360 = smul.addr %s359, 512
        %s361 = scalar_lea.vmem [#allocation2], %s360
        %p362 = pneg %p51
        %p363 = pneg %p48
        %p364 = scmp.lt.s32.totalorder %s30, 1
        %s365 = scalar_select %p364, %s30, 1
        %s366 = smul.addr %s365, 8
        %s367 = scalar_lea.vmem %s1, %s366
        %p368 = pneg %p77
        %p369 = pneg %p74
        %p370 = scmp.lt.s32.totalorder %s30, 1
        %s371 = scalar_select %p370, %s30, 1
        %s372 = smul.addr %s371, 8
        %s373 = scalar_lea.vmem %s2, %s372
        %p374 = pneg %p103
        %p375 = pneg %p100
        %p376 = scmp.lt.s32.totalorder %s30, 1
        %s377 = scalar_select %p376, %s30, 1
        %s378 = smul.addr %s377, 8
        %s379 = scalar_lea.vmem %s3, %s378
        %p380 = pneg %p129
        %p381 = pneg %p126
        %p382 = pneg %p150
        %p383 = pneg %p147
        %p384 = pneg %p171
        %p385 = pneg %p168
        %p386 = pneg %p192
        %p387 = pneg %p189
        %p388 = pneg %p213
        %p389 = pneg %p210
        %p390 = pneg %p239
        %p391 = pneg %p236
        %s392 = sand.u32 %s226, 1
        %s393 = scalar_lea.sflag [#allocation4], %s392
        %s394 = sand.u32 %s226, 1
        %s395 = smul.addr %s394, 512
        %s396 = scalar_lea.vmem [#allocation5], %s395
        %p397 = pneg %p265
        %p398 = pneg %p262
        %s399 = sand.u32 %s252, 1
        %s400 = scalar_lea.sflag [#allocation7], %s399
        %s401 = sand.u32 %s252, 1
        %s402 = smul.addr %s401, 8
        %s403 = scalar_lea.vmem [#allocation6], %s402
        %s404 = smul.u32 8, %s30
        %p405 = scmp.lt.s32.totalorder %s30, 1
        %s406 = scalar_select %p405, %s30, 1
        %s407 = smul.addr %s406, 8
        %s408 = scalar_lea.vmem %s1, %s407
        %p409 = scmp.lt.s32.totalorder %s30, 1
        %s410 = scalar_select %p409, %s30, 1
        %s411 = smul.addr %s410, 8
        %s412 = scalar_lea.vmem %s2, %s411
        %p413 = scmp.lt.s32.totalorder %s30, 1
        %s414 = scalar_select %p413, %s30, 1
        %s415 = smul.addr %s414, 8
        %s416 = scalar_lea.vmem %s3, %s415
        %s417 = smul.u32 8, %s30
        %v418 = vld [vmem:[%s351] sm:$0xff]
        %v419 = vld [vmem:[%s351 + $0x8] sm:$0xff]
        %v420 = vld [vmem:[%s351 + $0x10] sm:$0xff]
        %v421 = vld [vmem:[%s351 + $0x18] sm:$0xff]
        %v422 = vld [vmem:[%s351 + $0x20] sm:$0xff]
        %v423 = vld [vmem:[%s351 + $0x28] sm:$0xff]
        %v424 = vld [vmem:[%s351 + $0x30] sm:$0xff]
        %v425 = vld [vmem:[%s351 + $0x38] sm:$0xff]
        %v426 = vld [vmem:[%s351 + $0x40] sm:$0xff]
        %v427 = vld [vmem:[%s351 + $0x48] sm:$0xff]
        %v428 = vld [vmem:[%s351 + $0x50] sm:$0xff]
        %v429 = vld [vmem:[%s351 + $0x58] sm:$0xff]
        %v430 = vld [vmem:[%s351 + $0x60] sm:$0xff]
        %v431 = vld [vmem:[%s351 + $0x68] sm:$0xff]
        %v432 = vld [vmem:[%s351 + $0x70] sm:$0xff]
        %v433 = vld [vmem:[%s351 + $0x78] sm:$0xff]
        %v434 = vld [vmem:[%s351 + $0x80] sm:$0xff]
        %v435 = vld [vmem:[%s351 + $0x88] sm:$0xff]
        %v436 = vld [vmem:[%s351 + $0x90] sm:$0xff]
        %v437 = vld [vmem:[%s351 + $0x98] sm:$0xff]
        %v438 = vld [vmem:[%s351 + $0xa0] sm:$0xff]
        %v439 = vld [vmem:[%s351 + $0xa8] sm:$0xff]
        %v440 = vld [vmem:[%s351 + $0xb0] sm:$0xff]
        %v441 = vld [vmem:[%s351 + $0xb8] sm:$0xff]
        %v442 = vld [vmem:[%s351 + $0xc0] sm:$0xff]
        %v443 = vld [vmem:[%s351 + $0xc8] sm:$0xff]
        %v444 = vld [vmem:[%s351 + $0xd0] sm:$0xff]
        %v445 = vld [vmem:[%s351 + $0xd8] sm:$0xff]
        %v446 = vld [vmem:[%s351 + $0xe0] sm:$0xff]
        %v447 = vld [vmem:[%s351 + $0xe8] sm:$0xff]
        %v448 = vld [vmem:[%s351 + $0xf0] sm:$0xff]
        %v449 = vld [vmem:[%s351 + $0xf8] sm:$0xff]
        %v450 = vld [vmem:[%s351 + $0x100] sm:$0xff]
        %v451 = vld [vmem:[%s351 + $0x108] sm:$0xff]
        %v452 = vld [vmem:[%s351 + $0x110] sm:$0xff]
        %v453 = vld [vmem:[%s351 + $0x118] sm:$0xff]
        %v454 = vld [vmem:[%s351 + $0x120] sm:$0xff]
        %v455 = vld [vmem:[%s351 + $0x128] sm:$0xff]
        %v456 = vld [vmem:[%s351 + $0x130] sm:$0xff]
        %v457 = vld [vmem:[%s351 + $0x138] sm:$0xff]
        %v458 = vld [vmem:[%s351 + $0x140] sm:$0xff]
        %v459 = vld [vmem:[%s351 + $0x148] sm:$0xff]
        %v460 = vld [vmem:[%s351 + $0x150] sm:$0xff]
        %v461 = vld [vmem:[%s351 + $0x158] sm:$0xff]
        %v462 = vld [vmem:[%s351 + $0x160] sm:$0xff]
        %v463 = vld [vmem:[%s351 + $0x168] sm:$0xff]
        %v464 = vld [vmem:[%s351 + $0x170] sm:$0xff]
        %v465 = vld [vmem:[%s351 + $0x178] sm:$0xff]
        %v466 = vld [vmem:[%s351 + $0x180] sm:$0xff]
        %v467 = vld [vmem:[%s351 + $0x188] sm:$0xff]
        %v468 = vld [vmem:[%s351 + $0x190] sm:$0xff]
        %v469 = vld [vmem:[%s351 + $0x198] sm:$0xff]
        %v470 = vld [vmem:[%s351 + $0x1a0] sm:$0xff]
        %v471 = vld [vmem:[%s351 + $0x1a8] sm:$0xff]
        %v472 = vld [vmem:[%s351 + $0x1b0] sm:$0xff]
        %v473 = vld [vmem:[%s351 + $0x1b8] sm:$0xff]
        %v474 = vld [vmem:[%s351 + $0x1c0] sm:$0xff]
        %v475 = vld [vmem:[%s351 + $0x1c8] sm:$0xff]
        %v476 = vld [vmem:[%s351 + $0x1d0] sm:$0xff]
        %v477 = vld [vmem:[%s351 + $0x1d8] sm:$0xff]
        %v478 = vld [vmem:[%s351 + $0x1e0] sm:$0xff]
        %v479 = vld [vmem:[%s351 + $0x1e8] sm:$0xff]
        %v480 = vld [vmem:[%s351 + $0x1f0] sm:$0xff]
        %v481 = vld [vmem:[%s351 + $0x1f8] sm:$0xff]
        %v482 = vadd.f32 %v418, %v419
        %483 = vadd.xlane.f32.xlu0 %v482
        %v484 = vpop.xlane.xlu0 %483
        %v485 = vadd.f32 %v420, %v421
        %486 = vadd.xlane.f32.xlu0 %v485
        %v487 = vpop.xlane.xlu0 %486
        %v488 = vadd.f32 %v422, %v423
        %489 = vadd.xlane.f32.xlu0 %v488
        %v490 = vpop.xlane.xlu0 %489
        %v491 = vadd.f32 %v424, %v425
        %492 = vadd.xlane.f32.xlu0 %v491
        %v493 = vpop.xlane.xlu0 %492
        %v494 = vadd.f32 %v426, %v427
        %495 = vadd.xlane.f32.xlu0 %v494
        %v496 = vpop.xlane.xlu0 %495
        %v497 = vadd.f32 %v428, %v429
        %498 = vadd.xlane.f32.xlu0 %v497
        %v499 = vpop.xlane.xlu0 %498
        %v500 = vadd.f32 %v430, %v431
        %501 = vadd.xlane.f32.xlu0 %v500
        %v502 = vpop.xlane.xlu0 %501
        %v503 = vadd.f32 %v432, %v433
        %504 = vadd.xlane.f32.xlu0 %v503
        %v505 = vpop.xlane.xlu0 %504
        %v506 = vadd.f32 %v434, %v435
        %507 = vadd.xlane.f32.xlu0 %v506
        %v508 = vpop.xlane.xlu0 %507
        %v509 = vadd.f32 %v436, %v437
        %510 = vadd.xlane.f32.xlu0 %v509
        %v511 = vpop.xlane.xlu0 %510
        %v512 = vadd.f32 %v438, %v439
        %513 = vadd.xlane.f32.xlu0 %v512
        %v514 = vpop.xlane.xlu0 %513
        %v515 = vadd.f32 %v440, %v441
        %516 = vadd.xlane.f32.xlu0 %v515
        %v517 = vpop.xlane.xlu0 %516
        %v518 = vadd.f32 %v442, %v443
        %519 = vadd.xlane.f32.xlu0 %v518
        %v520 = vpop.xlane.xlu0 %519
        %v521 = vadd.f32 %v444, %v445
        %522 = vadd.xlane.f32.xlu0 %v521
        %v523 = vpop.xlane.xlu0 %522
        %v524 = vadd.f32 %v446, %v447
        %525 = vadd.xlane.f32.xlu0 %v524
        %v526 = vpop.xlane.xlu0 %525
        %v527 = vadd.f32 %v448, %v449
        %528 = vadd.xlane.f32.xlu0 %v527
        %v529 = vpop.xlane.xlu0 %528
        %v530 = vadd.f32 %v450, %v451
        %531 = vadd.xlane.f32.xlu0 %v530
        %v532 = vpop.xlane.xlu0 %531
        %v533 = vadd.f32 %v452, %v453
        %534 = vadd.xlane.f32.xlu0 %v533
        %v535 = vpop.xlane.xlu0 %534
        %v536 = vadd.f32 %v454, %v455
        %537 = vadd.xlane.f32.xlu0 %v536
        %v538 = vpop.xlane.xlu0 %537
        %v539 = vadd.f32 %v456, %v457
        %540 = vadd.xlane.f32.xlu0 %v539
        %v541 = vpop.xlane.xlu0 %540
        %v542 = vadd.f32 %v458, %v459
        %543 = vadd.xlane.f32.xlu0 %v542
        %v544 = vpop.xlane.xlu0 %543
        %v545 = vadd.f32 %v460, %v461
        %546 = vadd.xlane.f32.xlu0 %v545
        %v547 = vpop.xlane.xlu0 %546
        %v548 = vadd.f32 %v462, %v463
        %549 = vadd.xlane.f32.xlu0 %v548
        %v550 = vpop.xlane.xlu0 %549
        %v551 = vadd.f32 %v464, %v465
        %552 = vadd.xlane.f32.xlu0 %v551
        %v553 = vpop.xlane.xlu0 %552
        %v554 = vadd.f32 %v466, %v467
        %555 = vadd.xlane.f32.xlu0 %v554
        %v556 = vpop.xlane.xlu0 %555
        %v557 = vadd.f32 %v468, %v469
        %558 = vadd.xlane.f32.xlu0 %v557
        %v559 = vpop.xlane.xlu0 %558
        %v560 = vadd.f32 %v470, %v471
        %561 = vadd.xlane.f32.xlu0 %v560
        %v562 = vpop.xlane.xlu0 %561
        %v563 = vadd.f32 %v472, %v473
        %564 = vadd.xlane.f32.xlu0 %v563
        %v565 = vpop.xlane.xlu0 %564
        %v566 = vadd.f32 %v474, %v475
        %567 = vadd.xlane.f32.xlu0 %v566
        %v568 = vpop.xlane.xlu0 %567
        %v569 = vadd.f32 %v476, %v477
        %570 = vadd.xlane.f32.xlu0 %v569
        %v571 = vpop.xlane.xlu0 %570
        %v572 = vadd.f32 %v478, %v479
        %573 = vadd.xlane.f32.xlu0 %v572
        %v574 = vpop.xlane.xlu0 %573
        %v575 = vadd.f32 %v480, %v481
        %576 = vadd.xlane.f32.xlu0 %v575
        %v577 = vpop.xlane.xlu0 %576
        %v578 = vrcp.pop 256.0
        %v579 = vmul.f32 256.0, %v578
        %v580 = vsub.f32 1.0, %v579
        %v581 = vmul.f32 %v578, %v580
        %v582 = vadd.f32 %v578, %v581
        %vm583 = vweird.f32 %v578
        %v584 = vsel %vm583, %v578, %v582
        %v585 = vmul.f32 %v484, %v584
        %v586 = vmul.f32 %v487, %v584
        %v587 = vmul.f32 %v490, %v584
        %v588 = vmul.f32 %v493, %v584
        %v589 = vmul.f32 %v496, %v584
        %v590 = vmul.f32 %v499, %v584
        %v591 = vmul.f32 %v502, %v584
        %v592 = vmul.f32 %v505, %v584
        %v593 = vmul.f32 %v508, %v584
        %v594 = vmul.f32 %v511, %v584
        %v595 = vmul.f32 %v514, %v584
        %v596 = vmul.f32 %v517, %v584
        %v597 = vmul.f32 %v520, %v584
        %v598 = vmul.f32 %v523, %v584
        %v599 = vmul.f32 %v526, %v584
        %v600 = vmul.f32 %v529, %v584
        %v601 = vmul.f32 %v532, %v584
        %v602 = vmul.f32 %v535, %v584
        %v603 = vmul.f32 %v538, %v584
        %v604 = vmul.f32 %v541, %v584
        %v605 = vmul.f32 %v544, %v584
        %v606 = vmul.f32 %v547, %v584
        %v607 = vmul.f32 %v550, %v584
        %v608 = vmul.f32 %v553, %v584
        %v609 = vmul.f32 %v556, %v584
        %v610 = vmul.f32 %v559, %v584
        %v611 = vmul.f32 %v562, %v584
        %v612 = vmul.f32 %v565, %v584
        %v613 = vmul.f32 %v568, %v584
        %v614 = vmul.f32 %v571, %v584
        %v615 = vmul.f32 %v574, %v584
        %v616 = vmul.f32 %v577, %v584
        %v617 = vld [vmem:[%s408] sm:$0xff]
        %v650 = vlaneseq
        %v651 = vand.u32 %v650, 127
        %v652 = vperm.slane %v585, %v651
        %v653 = vadd.s32 %v651, 4294967288
        %v654 = vperm.slane %v586, %v653
        %vm655 = vcmask 130112
        %v656 = vsel %vm655, %v654, %v652
        %v657 = vadd.s32 %v651, 4294967280
        %v658 = vperm.slane %v587, %v657
        %vm659 = vcmask 195712
        %v660 = vsel %vm659, %v658, %v656
        %v661 = vadd.s32 %v651, 4294967272
        %v662 = vperm.slane %v588, %v661
        %vm663 = vcmask 261312
        %v664 = vsel %vm663, %v662, %v660
        %v665 = vperm.slane %v589, %v651
        %v666 = vperm.slane %v590, %v653
        %v667 = vsel %vm655, %v666, %v665
        %v668 = vperm.slane %v591, %v657
        %v669 = vsel %vm659, %v668, %v667
        %v670 = vperm.slane %v592, %v661
        %v671 = vsel %vm663, %v670, %v669
        %v672 = vperm.slane %v593, %v651
        %v673 = vperm.slane %v594, %v653
        %v674 = vsel %vm655, %v673, %v672
        %v675 = vperm.slane %v595, %v657
        %v676 = vsel %vm659, %v675, %v674
        %v677 = vperm.slane %v596, %v661
        %v678 = vsel %vm663, %v677, %v676
        %v679 = vperm.slane %v597, %v651
        %v680 = vperm.slane %v598, %v653
        %v681 = vsel %vm655, %v680, %v679
        %v682 = vperm.slane %v599, %v657
        %v683 = vsel %vm659, %v682, %v681
        %v684 = vperm.slane %v600, %v661
        %v685 = vsel %vm663, %v684, %v683
        %v686 = vperm.slane %v601, %v651
        %v687 = vperm.slane %v602, %v653
        %v688 = vsel %vm655, %v687, %v686
        %v689 = vperm.slane %v603, %v657
        %v690 = vsel %vm659, %v689, %v688
        %v691 = vperm.slane %v604, %v661
        %v692 = vsel %vm663, %v691, %v690
        %v693 = vperm.slane %v605, %v651
        %v694 = vperm.slane %v606, %v653
        %v695 = vsel %vm655, %v694, %v693
        %v696 = vperm.slane %v607, %v657
        %v697 = vsel %vm659, %v696, %v695
        %v698 = vperm.slane %v608, %v661
        %v699 = vsel %vm663, %v698, %v697
        %v700 = vperm.slane %v609, %v651
        %v701 = vperm.slane %v610, %v653
        %v702 = vsel %vm655, %v701, %v700
        %v703 = vperm.slane %v611, %v657
        %v704 = vsel %vm659, %v703, %v702
        %v705 = vperm.slane %v612, %v661
        %v706 = vsel %vm663, %v705, %v704
        %v707 = vperm.slane %v613, %v651
        %v708 = vperm.slane %v614, %v653
        %v709 = vsel %vm655, %v708, %v707
        %v710 = vperm.slane %v615, %v657
        %v711 = vsel %vm659, %v710, %v709
        %v712 = vperm.slane %v616, %v661
        %v713 = vsel %vm663, %v712, %v711
        %vm714 = vcmask 1041409
        %v715 = vsel %vm714, %v671, %v664
        %vm716 = vcmask 1042434
        %v717 = vsel %vm716, %v678, %v715
        %vm718 = vcmask 1043459
        %v719 = vsel %vm718, %v685, %v717
        %vm720 = vcmask 1044484
        %v721 = vsel %vm720, %v692, %v719
        %vm722 = vcmask 1045509
        %v723 = vsel %vm722, %v699, %v721
        %vm724 = vcmask 1046534
        %v725 = vsel %vm724, %v706, %v723
        %vm726 = vcmask 1047559
        %v727 = vsel %vm726, %v713, %v725
        %v729 = vadd.f32 %v617, %v727
        %v730 = vld [vmem:[%s412] sm:$0xff]
        %v731 = vld [vmem:[%s416] sm:$0xff]
        %v732 = vld [vmem:[%s4] sm:$0xff]
        %v733 = vld [vmem:[%s4 + $0x8] sm:$0xff]
        %v734 = vld [vmem:[%s4 + $0x10] sm:$0xff]
        %v735 = vld [vmem:[%s4 + $0x18] sm:$0xff]
        %v736 = vld [vmem:[%s4 + $0x20] sm:$0xff]
        %v737 = vld [vmem:[%s4 + $0x28] sm:$0xff]
        %v738 = vld [vmem:[%s4 + $0x30] sm:$0xff]
        %v739 = vld [vmem:[%s4 + $0x38] sm:$0xff]
        %v740 = vld [vmem:[%s4 + $0x40] sm:$0xff]
        %v741 = vld [vmem:[%s4 + $0x48] sm:$0xff]
        %v742 = vld [vmem:[%s4 + $0x50] sm:$0xff]
        %v743 = vld [vmem:[%s4 + $0x58] sm:$0xff]
        %v744 = vld [vmem:[%s5] sm:$0x1]
        %v746 = vperm.slane %v744, 0
        %vm748 = vcmask 261120
        %v750 = vsel %vm748, %v729, 0
        %752 = vmatpush.msra.mxu0 0.0
        %753 = vmatpush.msra.mxu0 0.0
        %754 = vmatpush.msra.mxu0 0.0
        %755 = vmatpush.msra.mxu0 0.0
        %756 = vmatpush.msra.mxu0 0.0
        %757 = vmatpush.msra.mxu0 0.0
        %758 = vmatpush.msra.mxu0 0.0
        %759 = vmatpush.msra.mxu0 0.0
        %760 = vmatpush.msra.mxu0 0.0
        %761 = vmatpush.msra.mxu0 0.0
        %762 = vmatpush.msra.mxu0 0.0
        %763 = vmatpush.msra.mxu0 0.0
        %764 = vmatpush.msra.mxu0 %v735
        %765 = vmatpush.msra.mxu0 %v734
        %766 = vmatpush.msra.mxu0 %v733
        %767 = vmatpush.msra.mxu0 %v732
        %768 = vmatmul.f32.gmra.mxu0 %v750
        %v769 = vpop.f32.mrf.mxu0
        %v770 = vadd.f32 %v746, %v769
        %771 = vdwg.mxu0
        %v772 = vmul.f32 %v770, 0.5
        %v773 = vmul.f32 %v770, 0.70710677
        %vm774 = vcmp.lt.f32.partialorder %v773, 0.0
        %v775 = vsel %vm774, -1.0, 1.0
        %v776 = vand.u32 2147483647, %v773
        %v777 = vmul.f32 %v776, 0.3275911
        %v778 = vadd.f32 %v777, 1.0
        %v779 = vrcp.pop %v778
        %v780 = vmul.f32 %v778, %v779
        %v781 = vsub.f32 1.0, %v780
        %v782 = vmul.f32 %v779, %v781
        %v783 = vadd.f32 %v779, %v782
        %vm784 = vweird.f32 %v778
        %vm785 = vweird.f32 %v779
        %vm786 = vmor %vm784, %vm785
        %v787 = vsel %vm786, %v779, %v783
        %v788 = vand.u32 2147483647, %v778
        %vm789 = vcmp.eq.f32.partialorder %v788, 8.507059e+37
        %v790 = vand.u32 %v778, 2147483648
        %v791 = vor.u32 1.1754944e-38, %v790
        %v792 = vsel %vm789, %v791, %v787
        %v793 = vmul.f32 1.0, %v792
        %v794 = vmul.f32 %v793, 1.0614054
        %v795 = vsub.f32 %v794, 1.4531521
        %v796 = vmul.f32 %v795, %v793
        %v797 = vadd.f32 %v796, 1.4214138
        %v798 = vmul.f32 %v797, %v793
        %v799 = vsub.f32 %v798, 0.28449672
        %v800 = vmul.f32 %v799, %v793
        %v801 = vadd.f32 %v800, 0.2548296
        %v802 = vmul.f32 %v801, %v793
        %v803 = vsub.f32 0.0, %v776
        %v804 = vmul.f32 %v803, %v776
        %v805 = vmul.f32 %v804, 1.442695
        %v806 = vpow.pop %v805
        %v807 = vmul.f32 %v802, %v806
        %v808 = vsub.f32 1.0, %v807
        %v809 = vmul.f32 %v775, %v808
        %v810 = vadd.f32 %v809, 1.0
        %v811 = vmul.f32 %v772, %v810
        %v812 = vsel %vm748, %v811, 0.0
        %813 = vadd.xlane.f32.xlu0 %v812
        %v814 = vpop.xlane.xlu0 %813
        %v815 = vrcp.pop 32.0
        %v816 = vmul.f32 32.0, %v815
        %v817 = vsub.f32 1.0, %v816
        %v818 = vmul.f32 %v815, %v817
        %v819 = vadd.f32 %v815, %v818
        %vm820 = vweird.f32 %v815
        %v821 = vsel %vm820, %v815, %v819
        %v822 = vmul.f32 %v814, %v821
        %v823 = vsub.f32 %v811, %v822
        %v824 = vmul.f32 %v823, %v823
        %v825 = vsel %vm748, %v824, 0.0
        %826 = vadd.xlane.f32.xlu0 %v825
        %v827 = vpop.xlane.xlu0 %826
        %v828 = vmul.f32 %v827, %v821
        %v829 = vadd.f32 %v828, 1e-05
        %v830 = vrsqrt.pop %v829
        %v831 = vmul.f32 %v830, %v829
        %v832 = vmul.f32 %v831, %v830
        %v833 = vmul.f32 0.5, %v832
        %v834 = vsub.f32 1.5, %v833
        %v835 = vmul.f32 %v830, %v834
        %vm836 = vweird.f32 %v829
        %vm837 = vweird.f32 %v830
        %vm838 = vmor %vm836, %vm837
        %v839 = vsel %vm838, %v830, %v835
        %v840 = vmul.f32 %v823, %v839
        %v841 = vmul.f32 %v840, %v730
        %v842 = vadd.f32 %v841, %v731
        %v843 = vld [vmem:[%s6] sm:$0x1]
        %v845 = vperm.slane %v843, 0
        %v848 = vsel %vm748, %v842, 0
        %850 = vmatpush.msra.mxu0 0.0
        %851 = vmatpush.msra.mxu0 0.0
        %852 = vmatpush.msra.mxu0 0.0
        %853 = vmatpush.msra.mxu0 0.0
        %854 = vmatpush.msra.mxu0 0.0
        %855 = vmatpush.msra.mxu0 0.0
        %856 = vmatpush.msra.mxu0 0.0
        %857 = vmatpush.msra.mxu0 0.0
        %858 = vmatpush.msra.mxu0 0.0
        %859 = vmatpush.msra.mxu0 0.0
        %860 = vmatpush.msra.mxu0 0.0
        %861 = vmatpush.msra.mxu0 0.0
        %862 = vmatpush.msra.mxu0 %v739
        %863 = vmatpush.msra.mxu0 %v738
        %864 = vmatpush.msra.mxu0 %v737
        %865 = vmatpush.msra.mxu0 %v736
        %866 = vmatmul.f32.gmra.mxu0 %v848
        %v867 = vpop.f32.mrf.mxu0
        %v868 = vadd.f32 %v845, %v867
        %869 = vdwg.mxu0
        %v870 = vmul.f32 %v868, 0.5
        %v871 = vmul.f32 %v868, 0.70710677
        %vm872 = vcmp.lt.f32.partialorder %v871, 0.0
        %v873 = vsel %vm872, -1.0, 1.0
        %v874 = vand.u32 2147483647, %v871
        %v875 = vmul.f32 %v874, 0.3275911
        %v876 = vadd.f32 %v875, 1.0
        %v877 = vrcp.pop %v876
        %v878 = vmul.f32 %v876, %v877
        %v879 = vsub.f32 1.0, %v878
        %v880 = vmul.f32 %v877, %v879
        %v881 = vadd.f32 %v877, %v880
        %vm882 = vweird.f32 %v876
        %vm883 = vweird.f32 %v877
        %vm884 = vmor %vm882, %vm883
        %v885 = vsel %vm884, %v877, %v881
        %v886 = vand.u32 2147483647, %v876
        %vm887 = vcmp.eq.f32.partialorder %v886, 8.507059e+37
        %v888 = vand.u32 %v876, 2147483648
        %v889 = vor.u32 1.1754944e-38, %v888
        %v890 = vsel %vm887, %v889, %v885
        %v891 = vmul.f32 1.0, %v890
        %v892 = vmul.f32 %v891, 1.0614054
        %v893 = vsub.f32 %v892, 1.4531521
        %v894 = vmul.f32 %v893, %v891
        %v895 = vadd.f32 %v894, 1.4214138
        %v896 = vmul.f32 %v895, %v891
        %v897 = vsub.f32 %v896, 0.28449672
        %v898 = vmul.f32 %v897, %v891
        %v899 = vadd.f32 %v898, 0.2548296
        %v900 = vmul.f32 %v899, %v891
        %v901 = vsub.f32 0.0, %v874
        %v902 = vmul.f32 %v901, %v874
        %v903 = vmul.f32 %v902, 1.442695
        %v904 = vpow.pop %v903
        %v905 = vmul.f32 %v900, %v904
        %v906 = vsub.f32 1.0, %v905
        %v907 = vmul.f32 %v873, %v906
        %v908 = vadd.f32 %v907, 1.0
        %v909 = vmul.f32 %v870, %v908
        %v910 = vsel %vm748, %v909, 0.0
        %911 = vadd.xlane.f32.xlu0 %v910
        %v912 = vpop.xlane.xlu0 %911
        %v913 = vmul.f32 %v912, %v821
        %v914 = vsub.f32 %v909, %v913
        %v915 = vmul.f32 %v914, %v914
        %v916 = vsel %vm748, %v915, 0.0
        %917 = vadd.xlane.f32.xlu0 %v916
        %v918 = vpop.xlane.xlu0 %917
        %v919 = vmul.f32 %v918, %v821
        %v920 = vadd.f32 %v919, 1e-05
        %v921 = vrsqrt.pop %v920
        %v922 = vmul.f32 %v921, %v920
        %v923 = vmul.f32 %v922, %v921
        %v924 = vmul.f32 0.5, %v923
        %v925 = vsub.f32 1.5, %v924
        %v926 = vmul.f32 %v921, %v925
        %vm927 = vweird.f32 %v920
        %vm928 = vweird.f32 %v921
        %vm929 = vmor %vm927, %vm928
        %v930 = vsel %vm929, %v921, %v926
        %v931 = vmul.f32 %v914, %v930
        %v932 = vmul.f32 %v931, %v730
        %v933 = vadd.f32 %v932, %v731
        %v934 = vld [vmem:[%s7] sm:$0x1]
        %v936 = vperm.slane %v934, 0
        %v939 = vsel %vm748, %v933, 0
        %941 = vmatpush.msra.mxu0 0.0
        %942 = vmatpush.msra.mxu0 0.0
        %943 = vmatpush.msra.mxu0 0.0
        %944 = vmatpush.msra.mxu0 0.0
        %945 = vmatpush.msra.mxu0 0.0
        %946 = vmatpush.msra.mxu0 0.0
        %947 = vmatpush.msra.mxu0 0.0
        %948 = vmatpush.msra.mxu0 0.0
        %949 = vmatpush.msra.mxu0 0.0
        %950 = vmatpush.msra.mxu0 0.0
        %951 = vmatpush.msra.mxu0 0.0
        %952 = vmatpush.msra.mxu0 0.0
        %953 = vmatpush.msra.mxu0 %v743
        %954 = vmatpush.msra.mxu0 %v742
        %955 = vmatpush.msra.mxu0 %v741
        %956 = vmatpush.msra.mxu0 %v740
        %957 = vmatmul.f32.gmra.mxu0 %v939
        %v958 = vpop.f32.mrf.mxu0
        %v959 = vadd.f32 %v936, %v958
        %960 = vdwg.mxu0
        %961 = vst.msk [vmem:[%s403] sm:$0xff] %vm748, %v959
        %v962 = vld [vmem:[%s351] sm:$0xff]
        %v963 = vld [vmem:[%s351 + $0x8] sm:$0xff]
        %v964 = vld [vmem:[%s351 + $0x10] sm:$0xff]
        %v965 = vld [vmem:[%s351 + $0x18] sm:$0xff]
        %v966 = vld [vmem:[%s351 + $0x20] sm:$0xff]
        %v967 = vld [vmem:[%s351 + $0x28] sm:$0xff]
        %v968 = vld [vmem:[%s351 + $0x30] sm:$0xff]
        %v969 = vld [vmem:[%s351 + $0x38] sm:$0xff]
        %v970 = vld [vmem:[%s351 + $0x40] sm:$0xff]
        %v971 = vld [vmem:[%s351 + $0x48] sm:$0xff]
        %v972 = vld [vmem:[%s351 + $0x50] sm:$0xff]
        %v973 = vld [vmem:[%s351 + $0x58] sm:$0xff]
        %v974 = vld [vmem:[%s351 + $0x60] sm:$0xff]
        %v975 = vld [vmem:[%s351 + $0x68] sm:$0xff]
        %v976 = vld [vmem:[%s351 + $0x70] sm:$0xff]
        %v977 = vld [vmem:[%s351 + $0x78] sm:$0xff]
        %v978 = vld [vmem:[%s351 + $0x80] sm:$0xff]
        %v979 = vld [vmem:[%s351 + $0x88] sm:$0xff]
        %v980 = vld [vmem:[%s351 + $0x90] sm:$0xff]
        %v981 = vld [vmem:[%s351 + $0x98] sm:$0xff]
        %v982 = vld [vmem:[%s351 + $0xa0] sm:$0xff]
        %v983 = vld [vmem:[%s351 + $0xa8] sm:$0xff]
        %v984 = vld [vmem:[%s351 + $0xb0] sm:$0xff]
        %v985 = vld [vmem:[%s351 + $0xb8] sm:$0xff]
        %v986 = vld [vmem:[%s351 + $0xc0] sm:$0xff]
        %v987 = vld [vmem:[%s351 + $0xc8] sm:$0xff]
        %v988 = vld [vmem:[%s351 + $0xd0] sm:$0xff]
        %v989 = vld [vmem:[%s351 + $0xd8] sm:$0xff]
        %v990 = vld [vmem:[%s351 + $0xe0] sm:$0xff]
        %v991 = vld [vmem:[%s351 + $0xe8] sm:$0xff]
        %v992 = vld [vmem:[%s351 + $0xf0] sm:$0xff]
        %v993 = vld [vmem:[%s351 + $0xf8] sm:$0xff]
        %v994 = vld [vmem:[%s351 + $0x100] sm:$0xff]
        %v995 = vld [vmem:[%s351 + $0x108] sm:$0xff]
        %v996 = vld [vmem:[%s351 + $0x110] sm:$0xff]
        %v997 = vld [vmem:[%s351 + $0x118] sm:$0xff]
        %v998 = vld [vmem:[%s351 + $0x120] sm:$0xff]
        %v999 = vld [vmem:[%s351 + $0x128] sm:$0xff]
        %v1000 = vld [vmem:[%s351 + $0x130] sm:$0xff]
        %v1001 = vld [vmem:[%s351 + $0x138] sm:$0xff]
        %v1002 = vld [vmem:[%s351 + $0x140] sm:$0xff]
        %v1003 = vld [vmem:[%s351 + $0x148] sm:$0xff]
        %v1004 = vld [vmem:[%s351 + $0x150] sm:$0xff]
        %v1005 = vld [vmem:[%s351 + $0x158] sm:$0xff]
        %v1006 = vld [vmem:[%s351 + $0x160] sm:$0xff]
        %v1007 = vld [vmem:[%s351 + $0x168] sm:$0xff]
        %v1008 = vld [vmem:[%s351 + $0x170] sm:$0xff]
        %v1009 = vld [vmem:[%s351 + $0x178] sm:$0xff]
        %v1010 = vld [vmem:[%s351 + $0x180] sm:$0xff]
        %v1011 = vld [vmem:[%s351 + $0x188] sm:$0xff]
        %v1012 = vld [vmem:[%s351 + $0x190] sm:$0xff]
        %v1013 = vld [vmem:[%s351 + $0x198] sm:$0xff]
        %v1014 = vld [vmem:[%s351 + $0x1a0] sm:$0xff]
        %v1015 = vld [vmem:[%s351 + $0x1a8] sm:$0xff]
        %v1016 = vld [vmem:[%s351 + $0x1b0] sm:$0xff]
        %v1017 = vld [vmem:[%s351 + $0x1b8] sm:$0xff]
        %v1018 = vld [vmem:[%s351 + $0x1c0] sm:$0xff]
        %v1019 = vld [vmem:[%s351 + $0x1c8] sm:$0xff]
        %v1020 = vld [vmem:[%s351 + $0x1d0] sm:$0xff]
        %v1021 = vld [vmem:[%s351 + $0x1d8] sm:$0xff]
        %v1022 = vld [vmem:[%s351 + $0x1e0] sm:$0xff]
        %v1023 = vld [vmem:[%s351 + $0x1e8] sm:$0xff]
        %v1024 = vld [vmem:[%s351 + $0x1f0] sm:$0xff]
        %v1025 = vld [vmem:[%s351 + $0x1f8] sm:$0xff]
        %v1026 = vperm.slane %v959, 0
        %v1027 = vlaneseq
        %v1028 = vshrl.u32 %v1027, 7
        %1030 = vset.pattern.permute.xlu0 %v1028
        %1031 = vperm.xlu0 %1030, %v1026
        %v1032 = vpop.permute.xlu0 %1031
        %v1033 = vlaneseq
        %v1034 = vshrl.u32 %v1033, 7
        %v1035 = vadd.s32 %v1034, 8
        %1036 = vset.pattern.permute.xlu0 %v1035
        %1037 = vperm.xlu0 %1036, %v1026
        %v1038 = vpop.permute.xlu0 %1037
        %v1039 = vlaneseq
        %v1040 = vshrl.u32 %v1039, 7
        %v1041 = vadd.s32 %v1040, 16
        %1042 = vset.pattern.permute.xlu0 %v1041
        %1043 = vperm.xlu0 %1042, %v1026
        %v1044 = vpop.permute.xlu0 %1043
        %v1045 = vlaneseq
        %v1046 = vshrl.u32 %v1045, 7
        %v1047 = vadd.s32 %v1046, 24
        %1048 = vset.pattern.permute.xlu0 %v1047
        %1049 = vperm.xlu0 %1048, %v1026
        %v1050 = vpop.permute.xlu0 %1049
        %v1051 = vperm.slane %v959, 1
        %v1052 = vlaneseq
        %v1053 = vshrl.u32 %v1052, 7
        %1055 = vset.pattern.permute.xlu0 %v1053
        %1056 = vperm.xlu0 %1055, %v1051
        %v1057 = vpop.permute.xlu0 %1056
        %v1058 = vlaneseq
        %v1059 = vshrl.u32 %v1058, 7
        %v1060 = vadd.s32 %v1059, 8
        %1061 = vset.pattern.permute.xlu0 %v1060
        %1062 = vperm.xlu0 %1061, %v1051
        %v1063 = vpop.permute.xlu0 %1062
        %v1064 = vlaneseq
        %v1065 = vshrl.u32 %v1064, 7
        %v1066 = vadd.s32 %v1065, 16
        %1067 = vset.pattern.permute.xlu0 %v1066
        %1068 = vperm.xlu0 %1067, %v1051
        %v1069 = vpop.permute.xlu0 %1068
        %v1070 = vlaneseq
        %v1071 = vshrl.u32 %v1070, 7
        %v1072 = vadd.s32 %v1071, 24
        %1073 = vset.pattern.permute.xlu0 %v1072
        %1074 = vperm.xlu0 %1073, %v1051
        %v1075 = vpop.permute.xlu0 %1074
        %v1076 = vperm.slane %v959, 2
        %v1077 = vlaneseq
        %v1078 = vshrl.u32 %v1077, 7
        %1080 = vset.pattern.permute.xlu0 %v1078
        %1081 = vperm.xlu0 %1080, %v1076
        %v1082 = vpop.permute.xlu0 %1081
        %v1083 = vlaneseq
        %v1084 = vshrl.u32 %v1083, 7
        %v1085 = vadd.s32 %v1084, 8
        %1086 = vset.pattern.permute.xlu0 %v1085
        %1087 = vperm.xlu0 %1086, %v1076
        %v1088 = vpop.permute.xlu0 %1087
        %v1089 = vlaneseq
        %v1090 = vshrl.u32 %v1089, 7
        %v1091 = vadd.s32 %v1090, 16
        %1092 = vset.pattern.permute.xlu0 %v1091
        %1093 = vperm.xlu0 %1092, %v1076
        %v1094 = vpop.permute.xlu0 %1093
        %v1095 = vlaneseq
        %v1096 = vshrl.u32 %v1095, 7
        %v1097 = vadd.s32 %v1096, 24
        %1098 = vset.pattern.permute.xlu0 %v1097
        %1099 = vperm.xlu0 %1098, %v1076
        %v1100 = vpop.permute.xlu0 %1099
        %v1101 = vperm.slane %v959, 3
        %v1102 = vlaneseq
        %v1103 = vshrl.u32 %v1102, 7
        %1105 = vset.pattern.permute.xlu0 %v1103
        %1106 = vperm.xlu0 %1105, %v1101
        %v1107 = vpop.permute.xlu0 %1106
        %v1108 = vlaneseq
        %v1109 = vshrl.u32 %v1108, 7
        %v1110 = vadd.s32 %v1109, 8
        %1111 = vset.pattern.permute.xlu0 %v1110
        %1112 = vperm.xlu0 %1111, %v1101
        %v1113 = vpop.permute.xlu0 %1112
        %v1114 = vlaneseq
        %v1115 = vshrl.u32 %v1114, 7
        %v1116 = vadd.s32 %v1115, 16
        %1117 = vset.pattern.permute.xlu0 %v1116
        %1118 = vperm.xlu0 %1117, %v1101
        %v1119 = vpop.permute.xlu0 %1118
        %v1120 = vlaneseq
        %v1121 = vshrl.u32 %v1120, 7
        %v1122 = vadd.s32 %v1121, 24
        %1123 = vset.pattern.permute.xlu0 %v1122
        %1124 = vperm.xlu0 %1123, %v1101
        %v1125 = vpop.permute.xlu0 %1124
        %v1126 = vperm.slane %v959, 4
        %v1127 = vlaneseq
        %v1128 = vshrl.u32 %v1127, 7
        %1130 = vset.pattern.permute.xlu0 %v1128
        %1131 = vperm.xlu0 %1130, %v1126
        %v1132 = vpop.permute.xlu0 %1131
        %v1133 = vlaneseq
        %v1134 = vshrl.u32 %v1133, 7
        %v1135 = vadd.s32 %v1134, 8
        %1136 = vset.pattern.permute.xlu0 %v1135
        %1137 = vperm.xlu0 %1136, %v1126
        %v1138 = vpop.permute.xlu0 %1137
        %v1139 = vlaneseq
        %v1140 = vshrl.u32 %v1139, 7
        %v1141 = vadd.s32 %v1140, 16
        %1142 = vset.pattern.permute.xlu0 %v1141
        %1143 = vperm.xlu0 %1142, %v1126
        %v1144 = vpop.permute.xlu0 %1143
        %v1145 = vlaneseq
        %v1146 = vshrl.u32 %v1145, 7
        %v1147 = vadd.s32 %v1146, 24
        %1148 = vset.pattern.permute.xlu0 %v1147
        %1149 = vperm.xlu0 %1148, %v1126
        %v1150 = vpop.permute.xlu0 %1149
        %v1151 = vperm.slane %v959, 5
        %v1152 = vlaneseq
        %v1153 = vshrl.u32 %v1152, 7
        %1155 = vset.pattern.permute.xlu0 %v1153
        %1156 = vperm.xlu0 %1155, %v1151
        %v1157 = vpop.permute.xlu0 %1156
        %v1158 = vlaneseq
        %v1159 = vshrl.u32 %v1158, 7
        %v1160 = vadd.s32 %v1159, 8
        %1161 = vset.pattern.permute.xlu0 %v1160
        %1162 = vperm.xlu0 %1161, %v1151
        %v1163 = vpop.permute.xlu0 %1162
        %v1164 = vlaneseq
        %v1165 = vshrl.u32 %v1164, 7
        %v1166 = vadd.s32 %v1165, 16
        %1167 = vset.pattern.permute.xlu0 %v1166
        %1168 = vperm.xlu0 %1167, %v1151
        %v1169 = vpop.permute.xlu0 %1168
        %v1170 = vlaneseq
        %v1171 = vshrl.u32 %v1170, 7
        %v1172 = vadd.s32 %v1171, 24
        %1173 = vset.pattern.permute.xlu0 %v1172
        %1174 = vperm.xlu0 %1173, %v1151
        %v1175 = vpop.permute.xlu0 %1174
        %v1176 = vperm.slane %v959, 6
        %v1177 = vlaneseq
        %v1178 = vshrl.u32 %v1177, 7
        %1180 = vset.pattern.permute.xlu0 %v1178
        %1181 = vperm.xlu0 %1180, %v1176
        %v1182 = vpop.permute.xlu0 %1181
        %v1183 = vlaneseq
        %v1184 = vshrl.u32 %v1183, 7
        %v1185 = vadd.s32 %v1184, 8
        %1186 = vset.pattern.permute.xlu0 %v1185
        %1187 = vperm.xlu0 %1186, %v1176
        %v1188 = vpop.permute.xlu0 %1187
        %v1189 = vlaneseq
        %v1190 = vshrl.u32 %v1189, 7
        %v1191 = vadd.s32 %v1190, 16
        %1192 = vset.pattern.permute.xlu0 %v1191
        %1193 = vperm.xlu0 %1192, %v1176
        %v1194 = vpop.permute.xlu0 %1193
        %v1195 = vlaneseq
        %v1196 = vshrl.u32 %v1195, 7
        %v1197 = vadd.s32 %v1196, 24
        %1198 = vset.pattern.permute.xlu0 %v1197
        %1199 = vperm.xlu0 %1198, %v1176
        %v1200 = vpop.permute.xlu0 %1199
        %v1201 = vperm.slane %v959, 7
        %v1202 = vlaneseq
        %v1203 = vshrl.u32 %v1202, 7
        %1205 = vset.pattern.permute.xlu0 %v1203
        %1206 = vperm.xlu0 %1205, %v1201
        %v1207 = vpop.permute.xlu0 %1206
        %v1208 = vlaneseq
        %v1209 = vshrl.u32 %v1208, 7
        %v1210 = vadd.s32 %v1209, 8
        %1211 = vset.pattern.permute.xlu0 %v1210
        %1212 = vperm.xlu0 %1211, %v1201
        %v1213 = vpop.permute.xlu0 %1212
        %v1214 = vlaneseq
        %v1215 = vshrl.u32 %v1214, 7
        %v1216 = vadd.s32 %v1215, 16
        %1217 = vset.pattern.permute.xlu0 %v1216
        %1218 = vperm.xlu0 %1217, %v1201
        %v1219 = vpop.permute.xlu0 %1218
        %v1220 = vlaneseq
        %v1221 = vshrl.u32 %v1220, 7
        %v1222 = vadd.s32 %v1221, 24
        %1223 = vset.pattern.permute.xlu0 %v1222
        %1224 = vperm.xlu0 %1223, %v1201
        %v1225 = vpop.permute.xlu0 %1224
        %v1226 = vadd.f32 %v962, %v1032
        %v1227 = vadd.f32 %v963, %v1032
        %v1228 = vadd.f32 %v964, %v1038
        %v1229 = vadd.f32 %v965, %v1038
        %v1230 = vadd.f32 %v966, %v1044
        %v1231 = vadd.f32 %v967, %v1044
        %v1232 = vadd.f32 %v968, %v1050
        %v1233 = vadd.f32 %v969, %v1050
        %v1234 = vadd.f32 %v970, %v1057
        %v1235 = vadd.f32 %v971, %v1057
        %v1236 = vadd.f32 %v972, %v1063
        %v1237 = vadd.f32 %v973, %v1063
        %v1238 = vadd.f32 %v974, %v1069
        %v1239 = vadd.f32 %v975, %v1069
        %v1240 = vadd.f32 %v976, %v1075
        %v1241 = vadd.f32 %v977, %v1075
        %v1242 = vadd.f32 %v978, %v1082
        %v1243 = vadd.f32 %v979, %v1082
        %v1244 = vadd.f32 %v980, %v1088
        %v1245 = vadd.f32 %v981, %v1088
        %v1246 = vadd.f32 %v982, %v1094
        %v1247 = vadd.f32 %v983, %v1094
        %v1248 = vadd.f32 %v984, %v1100
        %v1249 = vadd.f32 %v985, %v1100
        %v1250 = vadd.f32 %v986, %v1107
        %v1251 = vadd.f32 %v987, %v1107
        %v1252 = vadd.f32 %v988, %v1113
        %v1253 = vadd.f32 %v989, %v1113
        %v1254 = vadd.f32 %v990, %v1119
        %v1255 = vadd.f32 %v991, %v1119
        %v1256 = vadd.f32 %v992, %v1125
        %v1257 = vadd.f32 %v993, %v1125
        %v1258 = vadd.f32 %v994, %v1132
        %v1259 = vadd.f32 %v995, %v1132
        %v1260 = vadd.f32 %v996, %v1138
        %v1261 = vadd.f32 %v997, %v1138
        %v1262 = vadd.f32 %v998, %v1144
        %v1263 = vadd.f32 %v999, %v1144
        %v1264 = vadd.f32 %v1000, %v1150
        %v1265 = vadd.f32 %v1001, %v1150
        %v1266 = vadd.f32 %v1002, %v1157
        %v1267 = vadd.f32 %v1003, %v1157
        %v1268 = vadd.f32 %v1004, %v1163
        %v1269 = vadd.f32 %v1005, %v1163
        %v1270 = vadd.f32 %v1006, %v1169
        %v1271 = vadd.f32 %v1007, %v1169
        %v1272 = vadd.f32 %v1008, %v1175
        %v1273 = vadd.f32 %v1009, %v1175
        %v1274 = vadd.f32 %v1010, %v1182
        %v1275 = vadd.f32 %v1011, %v1182
        %v1276 = vadd.f32 %v1012, %v1188
        %v1277 = vadd.f32 %v1013, %v1188
        %v1278 = vadd.f32 %v1014, %v1194
        %v1279 = vadd.f32 %v1015, %v1194
        %v1280 = vadd.f32 %v1016, %v1200
        %v1281 = vadd.f32 %v1017, %v1200
        %v1282 = vadd.f32 %v1018, %v1207
        %v1283 = vadd.f32 %v1019, %v1207
        %v1284 = vadd.f32 %v1020, %v1213
        %v1285 = vadd.f32 %v1021, %v1213
        %v1286 = vadd.f32 %v1022, %v1219
        %v1287 = vadd.f32 %v1023, %v1219
        %v1288 = vadd.f32 %v1024, %v1225
        %v1289 = vadd.f32 %v1025, %v1225
        %1290 = vst [vmem:[%s396] sm:$0xff] %v1226
        %1291 = vst [vmem:[%s396 + $0x8] sm:$0xff] %v1227
        %1292 = vst [vmem:[%s396 + $0x10] sm:$0xff] %v1228
        %1293 = vst [vmem:[%s396 + $0x18] sm:$0xff] %v1229
        %1294 = vst [vmem:[%s396 + $0x20] sm:$0xff] %v1230
        %1295 = vst [vmem:[%s396 + $0x28] sm:$0xff] %v1231
        %1296 = vst [vmem:[%s396 + $0x30] sm:$0xff] %v1232
        %1297 = vst [vmem:[%s396 + $0x38] sm:$0xff] %v1233
        %1298 = vst [vmem:[%s396 + $0x40] sm:$0xff] %v1234
        %1299 = vst [vmem:[%s396 + $0x48] sm:$0xff] %v1235
        %1300 = vst [vmem:[%s396 + $0x50] sm:$0xff] %v1236
        %1301 = vst [vmem:[%s396 + $0x58] sm:$0xff] %v1237
        %1302 = vst [vmem:[%s396 + $0x60] sm:$0xff] %v1238
        %1303 = vst [vmem:[%s396 + $0x68] sm:$0xff] %v1239
        %1304 = vst [vmem:[%s396 + $0x70] sm:$0xff] %v1240
        %1305 = vst [vmem:[%s396 + $0x78] sm:$0xff] %v1241
        %1306 = vst [vmem:[%s396 + $0x80] sm:$0xff] %v1242
        %1307 = vst [vmem:[%s396 + $0x88] sm:$0xff] %v1243
        %1308 = vst [vmem:[%s396 + $0x90] sm:$0xff] %v1244
        %1309 = vst [vmem:[%s396 + $0x98] sm:$0xff] %v1245
        %1310 = vst [vmem:[%s396 + $0xa0] sm:$0xff] %v1246
        %1311 = vst [vmem:[%s396 + $0xa8] sm:$0xff] %v1247
        %1312 = vst [vmem:[%s396 + $0xb0] sm:$0xff] %v1248
        %1313 = vst [vmem:[%s396 + $0xb8] sm:$0xff] %v1249
        %1314 = vst [vmem:[%s396 + $0xc0] sm:$0xff] %v1250
        %1315 = vst [vmem:[%s396 + $0xc8] sm:$0xff] %v1251
        %1316 = vst [vmem:[%s396 + $0xd0] sm:$0xff] %v1252
        %1317 = vst [vmem:[%s396 + $0xd8] sm:$0xff] %v1253
        %1318 = vst [vmem:[%s396 + $0xe0] sm:$0xff] %v1254
        %1319 = vst [vmem:[%s396 + $0xe8] sm:$0xff] %v1255
        %1320 = vst [vmem:[%s396 + $0xf0] sm:$0xff] %v1256
        %1321 = vst [vmem:[%s396 + $0xf8] sm:$0xff] %v1257
        %1322 = vst [vmem:[%s396 + $0x100] sm:$0xff] %v1258
        %1323 = vst [vmem:[%s396 + $0x108] sm:$0xff] %v1259
        %1324 = vst [vmem:[%s396 + $0x110] sm:$0xff] %v1260
        %1325 = vst [vmem:[%s396 + $0x118] sm:$0xff] %v1261
        %1326 = vst [vmem:[%s396 + $0x120] sm:$0xff] %v1262
        %1327 = vst [vmem:[%s396 + $0x128] sm:$0xff] %v1263
        %1328 = vst [vmem:[%s396 + $0x130] sm:$0xff] %v1264
        %1329 = vst [vmem:[%s396 + $0x138] sm:$0xff] %v1265
        %1330 = vst [vmem:[%s396 + $0x140] sm:$0xff] %v1266
        %1331 = vst [vmem:[%s396 + $0x148] sm:$0xff] %v1267
        %1332 = vst [vmem:[%s396 + $0x150] sm:$0xff] %v1268
        %1333 = vst [vmem:[%s396 + $0x158] sm:$0xff] %v1269
        %1334 = vst [vmem:[%s396 + $0x160] sm:$0xff] %v1270
        %1335 = vst [vmem:[%s396 + $0x168] sm:$0xff] %v1271
        %1336 = vst [vmem:[%s396 + $0x170] sm:$0xff] %v1272
        %1337 = vst [vmem:[%s396 + $0x178] sm:$0xff] %v1273
        %1338 = vst [vmem:[%s396 + $0x180] sm:$0xff] %v1274
        %1339 = vst [vmem:[%s396 + $0x188] sm:$0xff] %v1275
        %1340 = vst [vmem:[%s396 + $0x190] sm:$0xff] %v1276
        %1341 = vst [vmem:[%s396 + $0x198] sm:$0xff] %v1277
        %1342 = vst [vmem:[%s396 + $0x1a0] sm:$0xff] %v1278
        %1343 = vst [vmem:[%s396 + $0x1a8] sm:$0xff] %v1279
        %1344 = vst [vmem:[%s396 + $0x1b0] sm:$0xff] %v1280
        %1345 = vst [vmem:[%s396 + $0x1b8] sm:$0xff] %v1281
        %1346 = vst [vmem:[%s396 + $0x1c0] sm:$0xff] %v1282
        %1347 = vst [vmem:[%s396 + $0x1c8] sm:$0xff] %v1283
        %1348 = vst [vmem:[%s396 + $0x1d0] sm:$0xff] %v1284
        %1349 = vst [vmem:[%s396 + $0x1d8] sm:$0xff] %v1285
        %1350 = vst [vmem:[%s396 + $0x1e0] sm:$0xff] %v1286
        %1351 = vst [vmem:[%s396 + $0x1e8] sm:$0xff] %v1287
        %1352 = vst [vmem:[%s396 + $0x1f0] sm:$0xff] %v1288
        %1353 = vst [vmem:[%s396 + $0x1f8] sm:$0xff] %v1289
        %s1354 = sand.u32 %s226, 1
        %s1355 = scalar_lea.sflag [#allocation4], %s1354
        %s1356 = sand.u32 %s226, 1
        %s1357 = smul.addr %s1356, 512
        %s1358 = scalar_lea.vmem [#allocation5], %s1357
        %s1359 = sand.u32 %s252, 1
        %s1360 = scalar_lea.sflag [#allocation7], %s1359
        %s1361 = sand.u32 %s252, 1
        %s1362 = smul.addr %s1361, 8
        %s1363 = scalar_lea.vmem [#allocation6], %s1362
        // Predicated region
        $region57: #{tpu_custom_call.1} parent=51 // pred_check
          %p1364 = pneg %p236
        $region58: #{tpu_custom_call.1} parent=51 // pred_check_branch
          %1366 = sbr.rel (%p1364) target = $region60
        $region59: #{tpu_custom_call.1} parent=51 // pred_region
          %s1367 = smul.u32 8, %s30
          %1369 = vsyncadd %s1355, 0
          %s1370 = smul.addr %s1367, 8
          %s1371 = smul.addr %s1370, 8
          %s1372 = scalar_lea.hbm %s8, %s1371
          %s1373 = sshll.u32 %s1358, 4
          %s1374 = int_to_ptr.vmem [resolvable:$true] %s1373
          %s1375 = sshll.u32 %s1372, 4
          %s1376 = int_to_ptr.hbm [resolvable:$true] %s1375
          %1381 = dma.vmem_to_hbm [thread:$0]  %s1374, 8192, %s1376, %s1355, 256, 256, 16
        $region60: #{tpu_custom_call.1} parent=51 // pred_fallthru
          _
        // Predicated region
        $region61: #{tpu_custom_call.1} parent=51 // pred_check
          %p1382 = pneg %p262
        $region62: #{tpu_custom_call.1} parent=51 // pred_check_branch
          %1384 = sbr.rel (%p1382) target = $region64
        $region63: #{tpu_custom_call.1} parent=51 // pred_region
          %1386 = vsyncadd %s1360, 0
          %s1387 = smul.addr %s30, 8
          %s1388 = scalar_lea.hbm %s9, %s1387
          %s1390 = sshll.u32 %s1363, 4
          %s1391 = int_to_ptr.vmem [resolvable:$true] %s1390
          %s1392 = sshll.u32 %s1388, 4
          %s1393 = int_to_ptr.hbm [resolvable:$true] %s1392
          %1395 = dma.vmem_to_hbm [thread:$0]  %s1391, 128, %s1393, %s1360
        $region64: #{tpu_custom_call.1} parent=51 // pred_fallthru
          _
      $region52: #{tpu_custom_call.1} parent=5 // pred_fallthru
        _
      %p1396 = scmp.le.s32.totalorder 2, %s25
      // Predicated region
      $region65: #{tpu_custom_call.1} parent=5 // pred_check
        %p1397 = pneg %p1396
      $region66: #{tpu_custom_call.1} parent=5 // pred_check_branch
        %1399 = sbr.rel (%p1397) target = $region68
      $region67: #{tpu_custom_call.1} parent=5 // pred_region
        %s1400 = ssub.s32 %s25, 2
        // Predicated region
        $region69: #{tpu_custom_call.1} parent=67 // pred_check
          %p1401 = pneg %p242
        $region70: #{tpu_custom_call.1} parent=67 // pred_check_branch
          %1403 = sbr.rel (%p1401) target = $region72
        $region71: #{tpu_custom_call.1} parent=67 // pred_region
          %s1404 = sand.u32 %s227, 1
          %s1405 = scalar_lea.sflag [#allocation4], %s1404
          %s1406 = sand.u32 %s227, 1
          %s1407 = smul.addr %s1406, 512
          %s1408 = scalar_lea.vmem [#allocation5], %s1407
          %1410 = dma.done %s1405, 8192
        $region72: #{tpu_custom_call.1} parent=67 // pred_fallthru
          _
        // Predicated region
        $region73: #{tpu_custom_call.1} parent=67 // pred_check
          %p1411 = pneg %p268
        $region74: #{tpu_custom_call.1} parent=67 // pred_check_branch
          %1413 = sbr.rel (%p1411) target = $region76
        $region75: #{tpu_custom_call.1} parent=67 // pred_region
          %s1414 = sand.u32 %s253, 1
          %s1415 = scalar_lea.sflag [#allocation7], %s1414
          %s1416 = sand.u32 %s253, 1
          %s1417 = smul.addr %s1416, 8
          %s1418 = scalar_lea.vmem [#allocation6], %s1417
          %1420 = dma.done %s1415, 128
        $region76: #{tpu_custom_call.1} parent=67 // pred_fallthru
          _
      $region68: #{tpu_custom_call.1} parent=5 // pred_fallthru
        _
    $region6: #{tpu_custom_call.1} parent=1 // loop_footer
      %s29 = sadd.s32 1, %s25
    $region7: #{tpu_custom_call.1} parent=1 // loop_footer_branch
      %24 = sbr.rel target = $region3
    $region8: #{tpu_custom_call.1} parent=1 // loop_exit
      _
    %1421 = vsyncpa [#allocation3], 1
    %s1422 = scalar_lea.sflag [#allocation3], 1
    %1423 = vsyncpa %s1422, 1
    %1424 = vsyncpa [#allocation4], 1
    %s1425 = scalar_lea.sflag [#allocation4], 1
    %1426 = vsyncpa %s1425, 1
    %1427 = vsyncpa [#allocation7], 1
    %s1428 = scalar_lea.sflag [#allocation7], 1
    %1429 = vsyncpa %s1428, 1

</llo_original>
